<compile_context>
chip_gen: v7x
topology: tpu7x:2x2x1
jax: 0.10.0
libtpu: 0.0.40
codegen_flags: <defaults>
</compile_context>

<pallas_src>
import jax
import jax.numpy as jnp
from jax import lax
from jax.experimental import pallas as pl
from jax.experimental.pallas import tpu as pltpu

VOCAB = 1000
VOCAB_PAD = 1024          # vocab padded to a lane-friendly multiple of 128
EMB_DIM = 64
NUM_FEAT = 2
H1, H2, OUT = 128, 64, 32
OUT_PAD = 128             # lane-dense output width (>= OUT, multiple of 128)
VC = 128                  # vocab chunk width (lanes) processed per inner step
N_CHUNKS = VOCAB_PAD // VC


def _round_up(x, m):
    return ((x + m - 1) // m) * m


def tanet_kernel(ids_ref, num_ref, wf_ref, w1n_ref, b1_ref,
                 w2_ref, b2_ref, w3_ref, b3_ref, out_ref):
    ids = ids_ref[...]                          # (TB, S) int32
    TB, S = ids.shape
    num = num_ref[...]                          # (TB, 2) f32

    # ---- layer-1 accumulator, initialized with numeric term + b1 (VPU) -----
    # cat([embedded, numeric]) @ W1 is split: the K=2 numeric part is two
    # broadcast FMAs on the VPU; b1 is folded into the init (no zero fill).
    acc = num[:, 0:1] * w1n_ref[0:1, :] + b1_ref[...]        # (TB, H1) f32
    for f in range(1, NUM_FEAT):
        acc = acc + num[:, f:f + 1] * w1n_ref[f:f + 1, :]

    # ---- EmbeddingBag(mean) fused with W1_emb, chunked over the vocab ------
    # counts[b, v] = #occurrences of v in bag b.  For each 128-lane vocab slab
    # we build the counts slab (S compares + adds, working set ~50 vregs) and
    # immediately feed it to the MXU against the matching W_fused rows
    # (W_fused already contains the 1/S mean scale, computed in f32).
    iota_v = lax.broadcasted_iota(jnp.int32, (TB, VC), 1)     # chunk-local ids
    for c in range(N_CHUNKS):                                 # static unroll (8)
        ids_c = ids - (c * VC)                                # shift to chunk frame
        counts = (ids_c[:, 0:1] == iota_v).astype(jnp.float32)
        for s in range(1, S):                                 # static unroll
            counts = counts + (ids_c[:, s:s + 1] == iota_v).astype(jnp.float32)
        acc = acc + jnp.dot(counts.astype(jnp.bfloat16),      # counts <= S: exact
                            wf_ref[c * VC:(c + 1) * VC, :],   # (VC, H1) bf16
                            preferred_element_type=jnp.float32)

    h1 = jnp.maximum(acc, 0.0)                                # (TB, 128)

    # ---- Linear(128, 64) + ReLU, Linear(64, 32 padded to 128) --------------
    h2 = jnp.dot(h1.astype(jnp.bfloat16), w2_ref[...],
                 preferred_element_type=jnp.float32) + b2_ref[...]
    h2 = jnp.maximum(h2, 0.0)                                 # (TB, 64)

    out_ref[...] = jnp.dot(h2.astype(jnp.bfloat16), w3_ref[...],
                           preferred_element_type=jnp.float32) + b3_ref[...]


def tanet_forward(text_ids, numeric, params, *, tile_b=None):
    """params are the f32 'PyTorch-layout' parameters from make_params."""
    emb, w1, b1, w2, b2, w3, b3 = params
    B, S = text_ids.shape

    # ---- kernel-side parameter prep (cheap; could be done offline) ---------
    emb_pad = jnp.zeros((VOCAB_PAD, EMB_DIM), jnp.float32).at[:VOCAB].set(emb)
    w1e, w1n = w1[:EMB_DIM], w1[EMB_DIM:]                     # (64,128), (2,128)
    # Fuse embedding table with W1_emb and the 1/S mean scale in f32; single
    # bf16 rounding on the fused weight.
    wf = ((emb_pad @ w1e) * (1.0 / S)).astype(jnp.bfloat16)   # (1024, 128)
    w2b = w2.astype(jnp.bfloat16)
    # Lane-dense output: zero-pad the final layer to 128 output columns.
    w3p = jnp.zeros((H2, OUT_PAD), jnp.float32).at[:, :OUT].set(w3)
    w3p = w3p.astype(jnp.bfloat16)
    b3p = jnp.zeros((1, OUT_PAD), jnp.float32).at[:, :OUT].set(b3)

    # ---- batch tiling -------------------------------------------------------
    # tile_b: multiple of 8, capped at 128 (keeps the per-chunk counts/iota
    # working set within the 64-vreg file), and chosen so the grid has >=2
    # steps — dimension_semantics=("parallel",) then shards across v7x's 2 TCs.
    if tile_b is None:
        B8 = _round_up(max(B, 1), 8)
        tile_b = min(128, max(8, _round_up(B8 // 2, 8)))
    B_pad = max(_round_up(B, tile_b), 2 * tile_b)

    ids_p = jnp.zeros((B_pad, S), jnp.int32).at[:B].set(text_ids)
    num_p = jnp.zeros((B_pad, NUM_FEAT), jnp.float32).at[:B].set(numeric)

    grid = (B_pad // tile_b,)
    full = lambda shape: pl.BlockSpec(shape, lambda i: (0, 0))
    batched = lambda shape: pl.BlockSpec(shape, lambda i: (i, 0))

    out = pl.pallas_call(
        tanet_kernel,
        out_shape=jax.ShapeDtypeStruct((B_pad, OUT_PAD), jnp.float32),
        grid=grid,
        in_specs=[
            batched((tile_b, S)),           # text ids
            batched((tile_b, NUM_FEAT)),    # numeric features
            full((VOCAB_PAD, H1)),          # fused (emb @ W1_emb) / S  (bf16)
            full((NUM_FEAT, H1)),           # W1 numeric part (f32, VPU path)
            full((1, H1)),                  # b1
            full((H1, H2)),                 # W2 (bf16)
            full((1, H2)),                  # b2
            full((H2, OUT_PAD)),            # W3 padded (bf16)
            full((1, OUT_PAD)),             # b3 padded
        ],
        out_specs=batched((tile_b, OUT_PAD)),
        compiler_params=pltpu.CompilerParams(
            dimension_semantics=("parallel",)),
    )(ids_p, num_p, wf, w1n, b1, w2b, b2, w3p, b3p)

    return out[:B, :OUT]


def make_params(key):
    """f32 master parameters with the same layout/semantics as the nn.Module."""
    ks = jax.random.split(key, 4)
    emb = jax.random.normal(ks[0], (VOCAB, EMB_DIM), jnp.float32)
    w1 = jax.random.normal(ks[1], (EMB_DIM + NUM_FEAT, H1), jnp.float32) * 0.05
    b1 = jnp.full((1, H1), 0.01, jnp.float32)
    w2 = jax.random.normal(ks[2], (H1, H2), jnp.float32) * 0.05
    b2 = jnp.full((1, H2), 0.01, jnp.float32)
    w3 = jax.random.normal(ks[3], (H2, OUT), jnp.float32) * 0.05
    b3 = jnp.full((1, OUT), 0.01, jnp.float32)
    return (emb, w1, b1, w2, b2, w3, b3)


def tanet_reference(text_ids, numeric, params):
    emb, w1, b1, w2, b2, w3, b3 = params
    gathered = jnp.take(emb, text_ids, axis=0)        # (B, S, D)
    mean_emb = jnp.mean(gathered, axis=1)             # EmbeddingBag(mode='mean')
    x = jnp.concatenate([mean_emb, numeric], axis=1)  # (B, 66)
    h1 = jnp.maximum(x @ w1 + b1, 0.0)
    h2 = jnp.maximum(h1 @ w2 + b2, 0.0)
    return h2 @ w3 + b3


if __name__ == "__main__":
    key = jax.random.PRNGKey(0)
    k_ids, k_num, k_par = jax.random.split(key, 3)

    B, S = 2, 8
    text = jax.random.randint(k_ids, (B, S), 0, VOCAB, dtype=jnp.int32)
    numeric = jax.random.normal(k_num, (B, NUM_FEAT), jnp.float32)
    params = make_params(k_par)

    out = tanet_forward(text, numeric, params)
    out = jax.block_until_ready(out)

    ref = tanet_reference(text, numeric, params)
    assert out.shape == (B, OUT)
    assert jnp.allclose(out, ref, atol=2e-2, rtol=2e-2), "mismatch vs reference"

    print("KERNEL_OK")
</pallas_src>

<mosaic_0001>
module attributes {stable_mosaic.version = 11 : i64} {
  func.func @tanet_kernel(%arg0: i32, %arg1: memref<8x8xi32, #tpu.memory_space<vmem>>, %arg2: memref<8x2xf32, #tpu.memory_space<vmem>>, %arg3: memref<1024x128xbf16, #tpu.memory_space<vmem>>, %arg4: memref<2x128xf32, #tpu.memory_space<vmem>>, %arg5: memref<1x128xf32, #tpu.memory_space<vmem>>, %arg6: memref<128x64xbf16, #tpu.memory_space<vmem>>, %arg7: memref<1x64xf32, #tpu.memory_space<vmem>>, %arg8: memref<64x128xbf16, #tpu.memory_space<vmem>>, %arg9: memref<1x128xf32, #tpu.memory_space<vmem>>, %arg10: memref<8x128xf32, #tpu.memory_space<vmem>>) attributes {dimension_semantics = [#tpu.dimension_semantics<parallel>], iteration_bounds = array<i64: 2>, scalar_prefetch = 0 : i64, scratch_operands = 0 : i64, tpu.core_type = #tpu.core_type<tc>, window_params = [{transform_indices = @transform_0, window_bounds = array<i64: 8, 8>}, {transform_indices = @transform_1, window_bounds = array<i64: 8, 2>}, {pipeline_mode = #tpu.pipeline_mode<synchronous>, transform_indices = @transform_2, window_bounds = array<i64: 1024, 128>}, {pipeline_mode = #tpu.pipeline_mode<synchronous>, transform_indices = @transform_3, window_bounds = array<i64: 2, 128>}, {pipeline_mode = #tpu.pipeline_mode<synchronous>, transform_indices = @transform_4, window_bounds = array<i64: 1, 128>}, {pipeline_mode = #tpu.pipeline_mode<synchronous>, transform_indices = @transform_5, window_bounds = array<i64: 128, 64>}, {pipeline_mode = #tpu.pipeline_mode<synchronous>, transform_indices = @transform_6, window_bounds = array<i64: 1, 64>}, {pipeline_mode = #tpu.pipeline_mode<synchronous>, transform_indices = @transform_7, window_bounds = array<i64: 64, 128>}, {pipeline_mode = #tpu.pipeline_mode<synchronous>, transform_indices = @transform_8, window_bounds = array<i64: 1, 128>}, {transform_indices = @transform_9, window_bounds = array<i64: 8, 128>}]} {
    %c0 = arith.constant 0 : index
    %c0_0 = arith.constant 0 : index
    %0 = vector.load %arg1[%c0, %c0_0] : memref<8x8xi32, #tpu.memory_space<vmem>>, vector<8x8xi32>
    %c0_1 = arith.constant 0 : index
    %c0_2 = arith.constant 0 : index
    %1 = vector.load %arg2[%c0_1, %c0_2] : memref<8x2xf32, #tpu.memory_space<vmem>>, vector<8x2xf32>
    %2 = vector.extract_strided_slice %1 {offsets = [0, 0], sizes = [8, 1], strides = [1, 1]} : vector<8x2xf32> to vector<8x1xf32>
    %c0_3 = arith.constant 0 : index
    %c0_4 = arith.constant 0 : index
    %3 = vector.load %arg4[%c0_3, %c0_4] : memref<2x128xf32, #tpu.memory_space<vmem>>, vector<1x128xf32>
    %4 = vector.broadcast %2 : vector<8x1xf32> to vector<8x128xf32>
    %5 = vector.broadcast %3 : vector<1x128xf32> to vector<8x128xf32>
    %6 = arith.mulf %4, %5 : vector<8x128xf32>
    %c0_5 = arith.constant 0 : index
    %c0_6 = arith.constant 0 : index
    %7 = vector.load %arg5[%c0_5, %c0_6] : memref<1x128xf32, #tpu.memory_space<vmem>>, vector<1x128xf32>
    %8 = vector.broadcast %7 : vector<1x128xf32> to vector<8x128xf32>
    %9 = arith.addf %6, %8 : vector<8x128xf32>
    %10 = vector.extract_strided_slice %1 {offsets = [0, 1], sizes = [8, 1], strides = [1, 1]} : vector<8x2xf32> to vector<8x1xf32>
    %c1 = arith.constant 1 : index
    %c0_7 = arith.constant 0 : index
    %11 = vector.load %arg4[%c1, %c0_7] : memref<2x128xf32, #tpu.memory_space<vmem>>, vector<1x128xf32>
    %12 = vector.broadcast %10 : vector<8x1xf32> to vector<8x128xf32>
    %13 = vector.broadcast %11 : vector<1x128xf32> to vector<8x128xf32>
    %14 = arith.mulf %12, %13 : vector<8x128xf32>
    %15 = arith.addf %9, %14 : vector<8x128xf32>
    %16 = tpu.iota {dimensions = array<i32: 1>} : vector<8x128xi32>
    %c0_i32 = arith.constant 0 : i32
    %17 = vector.broadcast %c0_i32 : i32 to vector<8x8xi32>
    %18 = arith.subi %0, %17 : vector<8x8xi32>
    %19 = vector.extract_strided_slice %18 {offsets = [0, 0], sizes = [8, 1], strides = [1, 1]} : vector<8x8xi32> to vector<8x1xi32>
    %20 = vector.broadcast %19 : vector<8x1xi32> to vector<8x128xi32>
    %21 = arith.cmpi eq, %20, %16 : vector<8x128xi32>
    %22 = arith.extui %21 : vector<8x128xi1> to vector<8x128xi32>
    %23 = arith.sitofp %22 : vector<8x128xi32> to vector<8x128xf32>
    %24 = vector.extract_strided_slice %18 {offsets = [0, 1], sizes = [8, 1], strides = [1, 1]} : vector<8x8xi32> to vector<8x1xi32>
    %25 = vector.broadcast %24 : vector<8x1xi32> to vector<8x128xi32>
    %26 = arith.cmpi eq, %25, %16 : vector<8x128xi32>
    %27 = arith.extui %26 : vector<8x128xi1> to vector<8x128xi32>
    %28 = arith.sitofp %27 : vector<8x128xi32> to vector<8x128xf32>
    %29 = arith.addf %23, %28 : vector<8x128xf32>
    %30 = vector.extract_strided_slice %18 {offsets = [0, 2], sizes = [8, 1], strides = [1, 1]} : vector<8x8xi32> to vector<8x1xi32>
    %31 = vector.broadcast %30 : vector<8x1xi32> to vector<8x128xi32>
    %32 = arith.cmpi eq, %31, %16 : vector<8x128xi32>
    %33 = arith.extui %32 : vector<8x128xi1> to vector<8x128xi32>
    %34 = arith.sitofp %33 : vector<8x128xi32> to vector<8x128xf32>
    %35 = arith.addf %29, %34 : vector<8x128xf32>
    %36 = vector.extract_strided_slice %18 {offsets = [0, 3], sizes = [8, 1], strides = [1, 1]} : vector<8x8xi32> to vector<8x1xi32>
    %37 = vector.broadcast %36 : vector<8x1xi32> to vector<8x128xi32>
    %38 = arith.cmpi eq, %37, %16 : vector<8x128xi32>
    %39 = arith.extui %38 : vector<8x128xi1> to vector<8x128xi32>
    %40 = arith.sitofp %39 : vector<8x128xi32> to vector<8x128xf32>
    %41 = arith.addf %35, %40 : vector<8x128xf32>
    %42 = vector.extract_strided_slice %18 {offsets = [0, 4], sizes = [8, 1], strides = [1, 1]} : vector<8x8xi32> to vector<8x1xi32>
    %43 = vector.broadcast %42 : vector<8x1xi32> to vector<8x128xi32>
    %44 = arith.cmpi eq, %43, %16 : vector<8x128xi32>
    %45 = arith.extui %44 : vector<8x128xi1> to vector<8x128xi32>
    %46 = arith.sitofp %45 : vector<8x128xi32> to vector<8x128xf32>
    %47 = arith.addf %41, %46 : vector<8x128xf32>
    %48 = vector.extract_strided_slice %18 {offsets = [0, 5], sizes = [8, 1], strides = [1, 1]} : vector<8x8xi32> to vector<8x1xi32>
    %49 = vector.broadcast %48 : vector<8x1xi32> to vector<8x128xi32>
    %50 = arith.cmpi eq, %49, %16 : vector<8x128xi32>
    %51 = arith.extui %50 : vector<8x128xi1> to vector<8x128xi32>
    %52 = arith.sitofp %51 : vector<8x128xi32> to vector<8x128xf32>
    %53 = arith.addf %47, %52 : vector<8x128xf32>
    %54 = vector.extract_strided_slice %18 {offsets = [0, 6], sizes = [8, 1], strides = [1, 1]} : vector<8x8xi32> to vector<8x1xi32>
    %55 = vector.broadcast %54 : vector<8x1xi32> to vector<8x128xi32>
    %56 = arith.cmpi eq, %55, %16 : vector<8x128xi32>
    %57 = arith.extui %56 : vector<8x128xi1> to vector<8x128xi32>
    %58 = arith.sitofp %57 : vector<8x128xi32> to vector<8x128xf32>
    %59 = arith.addf %53, %58 : vector<8x128xf32>
    %60 = vector.extract_strided_slice %18 {offsets = [0, 7], sizes = [8, 1], strides = [1, 1]} : vector<8x8xi32> to vector<8x1xi32>
    %61 = vector.broadcast %60 : vector<8x1xi32> to vector<8x128xi32>
    %62 = arith.cmpi eq, %61, %16 : vector<8x128xi32>
    %63 = arith.extui %62 : vector<8x128xi1> to vector<8x128xi32>
    %64 = arith.sitofp %63 : vector<8x128xi32> to vector<8x128xf32>
    %65 = arith.addf %59, %64 : vector<8x128xf32>
    %66 = arith.truncf %65 : vector<8x128xf32> to vector<8x128xbf16>
    %c0_8 = arith.constant 0 : index
    %c0_9 = arith.constant 0 : index
    %67 = vector.load %arg3[%c0_8, %c0_9] : memref<1024x128xbf16, #tpu.memory_space<vmem>>, vector<128x128xbf16>
    %cst = arith.constant dense<0.000000e+00> : vector<8x128xf32>
    %68 = tpu.matmul %66, %67, %cst {dimension_numbers = #tpu.dot_dimension_numbers<[1], [0], [0], [1], [0, 0, 1, 1], [], []>} : vector<8x128xbf16>, vector<128x128xbf16>, vector<8x128xf32> -> vector<8x128xf32>
    %69 = arith.addf %15, %68 : vector<8x128xf32>
    %c128_i32 = arith.constant 128 : i32
    %70 = vector.broadcast %c128_i32 : i32 to vector<8x8xi32>
    %71 = arith.subi %0, %70 : vector<8x8xi32>
    %72 = vector.extract_strided_slice %71 {offsets = [0, 0], sizes = [8, 1], strides = [1, 1]} : vector<8x8xi32> to vector<8x1xi32>
    %73 = vector.broadcast %72 : vector<8x1xi32> to vector<8x128xi32>
    %74 = arith.cmpi eq, %73, %16 : vector<8x128xi32>
    %75 = arith.extui %74 : vector<8x128xi1> to vector<8x128xi32>
    %76 = arith.sitofp %75 : vector<8x128xi32> to vector<8x128xf32>
    %77 = vector.extract_strided_slice %71 {offsets = [0, 1], sizes = [8, 1], strides = [1, 1]} : vector<8x8xi32> to vector<8x1xi32>
    %78 = vector.broadcast %77 : vector<8x1xi32> to vector<8x128xi32>
    %79 = arith.cmpi eq, %78, %16 : vector<8x128xi32>
    %80 = arith.extui %79 : vector<8x128xi1> to vector<8x128xi32>
    %81 = arith.sitofp %80 : vector<8x128xi32> to vector<8x128xf32>
    %82 = arith.addf %76, %81 : vector<8x128xf32>
    %83 = vector.extract_strided_slice %71 {offsets = [0, 2], sizes = [8, 1], strides = [1, 1]} : vector<8x8xi32> to vector<8x1xi32>
    %84 = vector.broadcast %83 : vector<8x1xi32> to vector<8x128xi32>
    %85 = arith.cmpi eq, %84, %16 : vector<8x128xi32>
    %86 = arith.extui %85 : vector<8x128xi1> to vector<8x128xi32>
    %87 = arith.sitofp %86 : vector<8x128xi32> to vector<8x128xf32>
    %88 = arith.addf %82, %87 : vector<8x128xf32>
    %89 = vector.extract_strided_slice %71 {offsets = [0, 3], sizes = [8, 1], strides = [1, 1]} : vector<8x8xi32> to vector<8x1xi32>
    %90 = vector.broadcast %89 : vector<8x1xi32> to vector<8x128xi32>
    %91 = arith.cmpi eq, %90, %16 : vector<8x128xi32>
    %92 = arith.extui %91 : vector<8x128xi1> to vector<8x128xi32>
    %93 = arith.sitofp %92 : vector<8x128xi32> to vector<8x128xf32>
    %94 = arith.addf %88, %93 : vector<8x128xf32>
    %95 = vector.extract_strided_slice %71 {offsets = [0, 4], sizes = [8, 1], strides = [1, 1]} : vector<8x8xi32> to vector<8x1xi32>
    %96 = vector.broadcast %95 : vector<8x1xi32> to vector<8x128xi32>
    %97 = arith.cmpi eq, %96, %16 : vector<8x128xi32>
    %98 = arith.extui %97 : vector<8x128xi1> to vector<8x128xi32>
    %99 = arith.sitofp %98 : vector<8x128xi32> to vector<8x128xf32>
    %100 = arith.addf %94, %99 : vector<8x128xf32>
    %101 = vector.extract_strided_slice %71 {offsets = [0, 5], sizes = [8, 1], strides = [1, 1]} : vector<8x8xi32> to vector<8x1xi32>
    %102 = vector.broadcast %101 : vector<8x1xi32> to vector<8x128xi32>
    %103 = arith.cmpi eq, %102, %16 : vector<8x128xi32>
    %104 = arith.extui %103 : vector<8x128xi1> to vector<8x128xi32>
    %105 = arith.sitofp %104 : vector<8x128xi32> to vector<8x128xf32>
    %106 = arith.addf %100, %105 : vector<8x128xf32>
    %107 = vector.extract_strided_slice %71 {offsets = [0, 6], sizes = [8, 1], strides = [1, 1]} : vector<8x8xi32> to vector<8x1xi32>
    %108 = vector.broadcast %107 : vector<8x1xi32> to vector<8x128xi32>
    %109 = arith.cmpi eq, %108, %16 : vector<8x128xi32>
    %110 = arith.extui %109 : vector<8x128xi1> to vector<8x128xi32>
    %111 = arith.sitofp %110 : vector<8x128xi32> to vector<8x128xf32>
    %112 = arith.addf %106, %111 : vector<8x128xf32>
    %113 = vector.extract_strided_slice %71 {offsets = [0, 7], sizes = [8, 1], strides = [1, 1]} : vector<8x8xi32> to vector<8x1xi32>
    %114 = vector.broadcast %113 : vector<8x1xi32> to vector<8x128xi32>
    %115 = arith.cmpi eq, %114, %16 : vector<8x128xi32>
    %116 = arith.extui %115 : vector<8x128xi1> to vector<8x128xi32>
    %117 = arith.sitofp %116 : vector<8x128xi32> to vector<8x128xf32>
    %118 = arith.addf %112, %117 : vector<8x128xf32>
    %119 = arith.truncf %118 : vector<8x128xf32> to vector<8x128xbf16>
    %c128 = arith.constant 128 : index
    %c0_10 = arith.constant 0 : index
    %120 = vector.load %arg3[%c128, %c0_10] : memref<1024x128xbf16, #tpu.memory_space<vmem>>, vector<128x128xbf16>
    %cst_11 = arith.constant dense<0.000000e+00> : vector<8x128xf32>
    %121 = tpu.matmul %119, %120, %cst_11 {dimension_numbers = #tpu.dot_dimension_numbers<[1], [0], [0], [1], [0, 0, 1, 1], [], []>} : vector<8x128xbf16>, vector<128x128xbf16>, vector<8x128xf32> -> vector<8x128xf32>
    %122 = arith.addf %69, %121 : vector<8x128xf32>
    %c256_i32 = arith.constant 256 : i32
    %123 = vector.broadcast %c256_i32 : i32 to vector<8x8xi32>
    %124 = arith.subi %0, %123 : vector<8x8xi32>
    %125 = vector.extract_strided_slice %124 {offsets = [0, 0], sizes = [8, 1], strides = [1, 1]} : vector<8x8xi32> to vector<8x1xi32>
    %126 = vector.broadcast %125 : vector<8x1xi32> to vector<8x128xi32>
    %127 = arith.cmpi eq, %126, %16 : vector<8x128xi32>
    %128 = arith.extui %127 : vector<8x128xi1> to vector<8x128xi32>
    %129 = arith.sitofp %128 : vector<8x128xi32> to vector<8x128xf32>
    %130 = vector.extract_strided_slice %124 {offsets = [0, 1], sizes = [8, 1], strides = [1, 1]} : vector<8x8xi32> to vector<8x1xi32>
    %131 = vector.broadcast %130 : vector<8x1xi32> to vector<8x128xi32>
    %132 = arith.cmpi eq, %131, %16 : vector<8x128xi32>
    %133 = arith.extui %132 : vector<8x128xi1> to vector<8x128xi32>
    %134 = arith.sitofp %133 : vector<8x128xi32> to vector<8x128xf32>
    %135 = arith.addf %129, %134 : vector<8x128xf32>
    %136 = vector.extract_strided_slice %124 {offsets = [0, 2], sizes = [8, 1], strides = [1, 1]} : vector<8x8xi32> to vector<8x1xi32>
    %137 = vector.broadcast %136 : vector<8x1xi32> to vector<8x128xi32>
    %138 = arith.cmpi eq, %137, %16 : vector<8x128xi32>
    %139 = arith.extui %138 : vector<8x128xi1> to vector<8x128xi32>
    %140 = arith.sitofp %139 : vector<8x128xi32> to vector<8x128xf32>
    %141 = arith.addf %135, %140 : vector<8x128xf32>
    %142 = vector.extract_strided_slice %124 {offsets = [0, 3], sizes = [8, 1], strides = [1, 1]} : vector<8x8xi32> to vector<8x1xi32>
    %143 = vector.broadcast %142 : vector<8x1xi32> to vector<8x128xi32>
    %144 = arith.cmpi eq, %143, %16 : vector<8x128xi32>
    %145 = arith.extui %144 : vector<8x128xi1> to vector<8x128xi32>
    %146 = arith.sitofp %145 : vector<8x128xi32> to vector<8x128xf32>
    %147 = arith.addf %141, %146 : vector<8x128xf32>
    %148 = vector.extract_strided_slice %124 {offsets = [0, 4], sizes = [8, 1], strides = [1, 1]} : vector<8x8xi32> to vector<8x1xi32>
    %149 = vector.broadcast %148 : vector<8x1xi32> to vector<8x128xi32>
    %150 = arith.cmpi eq, %149, %16 : vector<8x128xi32>
    %151 = arith.extui %150 : vector<8x128xi1> to vector<8x128xi32>
    %152 = arith.sitofp %151 : vector<8x128xi32> to vector<8x128xf32>
    %153 = arith.addf %147, %152 : vector<8x128xf32>
    %154 = vector.extract_strided_slice %124 {offsets = [0, 5], sizes = [8, 1], strides = [1, 1]} : vector<8x8xi32> to vector<8x1xi32>
    %155 = vector.broadcast %154 : vector<8x1xi32> to vector<8x128xi32>
    %156 = arith.cmpi eq, %155, %16 : vector<8x128xi32>
    %157 = arith.extui %156 : vector<8x128xi1> to vector<8x128xi32>
    %158 = arith.sitofp %157 : vector<8x128xi32> to vector<8x128xf32>
    %159 = arith.addf %153, %158 : vector<8x128xf32>
    %160 = vector.extract_strided_slice %124 {offsets = [0, 6], sizes = [8, 1], strides = [1, 1]} : vector<8x8xi32> to vector<8x1xi32>
    %161 = vector.broadcast %160 : vector<8x1xi32> to vector<8x128xi32>
    %162 = arith.cmpi eq, %161, %16 : vector<8x128xi32>
    %163 = arith.extui %162 : vector<8x128xi1> to vector<8x128xi32>
    %164 = arith.sitofp %163 : vector<8x128xi32> to vector<8x128xf32>
    %165 = arith.addf %159, %164 : vector<8x128xf32>
    %166 = vector.extract_strided_slice %124 {offsets = [0, 7], sizes = [8, 1], strides = [1, 1]} : vector<8x8xi32> to vector<8x1xi32>
    %167 = vector.broadcast %166 : vector<8x1xi32> to vector<8x128xi32>
    %168 = arith.cmpi eq, %167, %16 : vector<8x128xi32>
    %169 = arith.extui %168 : vector<8x128xi1> to vector<8x128xi32>
    %170 = arith.sitofp %169 : vector<8x128xi32> to vector<8x128xf32>
    %171 = arith.addf %165, %170 : vector<8x128xf32>
    %172 = arith.truncf %171 : vector<8x128xf32> to vector<8x128xbf16>
    %c256 = arith.constant 256 : index
    %c0_12 = arith.constant 0 : index
    %173 = vector.load %arg3[%c256, %c0_12] : memref<1024x128xbf16, #tpu.memory_space<vmem>>, vector<128x128xbf16>
    %cst_13 = arith.constant dense<0.000000e+00> : vector<8x128xf32>
    %174 = tpu.matmul %172, %173, %cst_13 {dimension_numbers = #tpu.dot_dimension_numbers<[1], [0], [0], [1], [0, 0, 1, 1], [], []>} : vector<8x128xbf16>, vector<128x128xbf16>, vector<8x128xf32> -> vector<8x128xf32>
    %175 = arith.addf %122, %174 : vector<8x128xf32>
    %c384_i32 = arith.constant 384 : i32
    %176 = vector.broadcast %c384_i32 : i32 to vector<8x8xi32>
    %177 = arith.subi %0, %176 : vector<8x8xi32>
    %178 = vector.extract_strided_slice %177 {offsets = [0, 0], sizes = [8, 1], strides = [1, 1]} : vector<8x8xi32> to vector<8x1xi32>
    %179 = vector.broadcast %178 : vector<8x1xi32> to vector<8x128xi32>
    %180 = arith.cmpi eq, %179, %16 : vector<8x128xi32>
    %181 = arith.extui %180 : vector<8x128xi1> to vector<8x128xi32>
    %182 = arith.sitofp %181 : vector<8x128xi32> to vector<8x128xf32>
    %183 = vector.extract_strided_slice %177 {offsets = [0, 1], sizes = [8, 1], strides = [1, 1]} : vector<8x8xi32> to vector<8x1xi32>
    %184 = vector.broadcast %183 : vector<8x1xi32> to vector<8x128xi32>
    %185 = arith.cmpi eq, %184, %16 : vector<8x128xi32>
    %186 = arith.extui %185 : vector<8x128xi1> to vector<8x128xi32>
    %187 = arith.sitofp %186 : vector<8x128xi32> to vector<8x128xf32>
    %188 = arith.addf %182, %187 : vector<8x128xf32>
    %189 = vector.extract_strided_slice %177 {offsets = [0, 2], sizes = [8, 1], strides = [1, 1]} : vector<8x8xi32> to vector<8x1xi32>
    %190 = vector.broadcast %189 : vector<8x1xi32> to vector<8x128xi32>
    %191 = arith.cmpi eq, %190, %16 : vector<8x128xi32>
    %192 = arith.extui %191 : vector<8x128xi1> to vector<8x128xi32>
    %193 = arith.sitofp %192 : vector<8x128xi32> to vector<8x128xf32>
    %194 = arith.addf %188, %193 : vector<8x128xf32>
    %195 = vector.extract_strided_slice %177 {offsets = [0, 3], sizes = [8, 1], strides = [1, 1]} : vector<8x8xi32> to vector<8x1xi32>
    %196 = vector.broadcast %195 : vector<8x1xi32> to vector<8x128xi32>
    %197 = arith.cmpi eq, %196, %16 : vector<8x128xi32>
    %198 = arith.extui %197 : vector<8x128xi1> to vector<8x128xi32>
    %199 = arith.sitofp %198 : vector<8x128xi32> to vector<8x128xf32>
    %200 = arith.addf %194, %199 : vector<8x128xf32>
    %201 = vector.extract_strided_slice %177 {offsets = [0, 4], sizes = [8, 1], strides = [1, 1]} : vector<8x8xi32> to vector<8x1xi32>
    %202 = vector.broadcast %201 : vector<8x1xi32> to vector<8x128xi32>
    %203 = arith.cmpi eq, %202, %16 : vector<8x128xi32>
    %204 = arith.extui %203 : vector<8x128xi1> to vector<8x128xi32>
    %205 = arith.sitofp %204 : vector<8x128xi32> to vector<8x128xf32>
    %206 = arith.addf %200, %205 : vector<8x128xf32>
    %207 = vector.extract_strided_slice %177 {offsets = [0, 5], sizes = [8, 1], strides = [1, 1]} : vector<8x8xi32> to vector<8x1xi32>
    %208 = vector.broadcast %207 : vector<8x1xi32> to vector<8x128xi32>
    %209 = arith.cmpi eq, %208, %16 : vector<8x128xi32>
    %210 = arith.extui %209 : vector<8x128xi1> to vector<8x128xi32>
    %211 = arith.sitofp %210 : vector<8x128xi32> to vector<8x128xf32>
    %212 = arith.addf %206, %211 : vector<8x128xf32>
    %213 = vector.extract_strided_slice %177 {offsets = [0, 6], sizes = [8, 1], strides = [1, 1]} : vector<8x8xi32> to vector<8x1xi32>
    %214 = vector.broadcast %213 : vector<8x1xi32> to vector<8x128xi32>
    %215 = arith.cmpi eq, %214, %16 : vector<8x128xi32>
    %216 = arith.extui %215 : vector<8x128xi1> to vector<8x128xi32>
    %217 = arith.sitofp %216 : vector<8x128xi32> to vector<8x128xf32>
    %218 = arith.addf %212, %217 : vector<8x128xf32>
    %219 = vector.extract_strided_slice %177 {offsets = [0, 7], sizes = [8, 1], strides = [1, 1]} : vector<8x8xi32> to vector<8x1xi32>
    %220 = vector.broadcast %219 : vector<8x1xi32> to vector<8x128xi32>
    %221 = arith.cmpi eq, %220, %16 : vector<8x128xi32>
    %222 = arith.extui %221 : vector<8x128xi1> to vector<8x128xi32>
    %223 = arith.sitofp %222 : vector<8x128xi32> to vector<8x128xf32>
    %224 = arith.addf %218, %223 : vector<8x128xf32>
    %225 = arith.truncf %224 : vector<8x128xf32> to vector<8x128xbf16>
    %c384 = arith.constant 384 : index
    %c0_14 = arith.constant 0 : index
    %226 = vector.load %arg3[%c384, %c0_14] : memref<1024x128xbf16, #tpu.memory_space<vmem>>, vector<128x128xbf16>
    %cst_15 = arith.constant dense<0.000000e+00> : vector<8x128xf32>
    %227 = tpu.matmul %225, %226, %cst_15 {dimension_numbers = #tpu.dot_dimension_numbers<[1], [0], [0], [1], [0, 0, 1, 1], [], []>} : vector<8x128xbf16>, vector<128x128xbf16>, vector<8x128xf32> -> vector<8x128xf32>
    %228 = arith.addf %175, %227 : vector<8x128xf32>
    %c512_i32 = arith.constant 512 : i32
    %229 = vector.broadcast %c512_i32 : i32 to vector<8x8xi32>
    %230 = arith.subi %0, %229 : vector<8x8xi32>
    %231 = vector.extract_strided_slice %230 {offsets = [0, 0], sizes = [8, 1], strides = [1, 1]} : vector<8x8xi32> to vector<8x1xi32>
    %232 = vector.broadcast %231 : vector<8x1xi32> to vector<8x128xi32>
    %233 = arith.cmpi eq, %232, %16 : vector<8x128xi32>
    %234 = arith.extui %233 : vector<8x128xi1> to vector<8x128xi32>
    %235 = arith.sitofp %234 : vector<8x128xi32> to vector<8x128xf32>
    %236 = vector.extract_strided_slice %230 {offsets = [0, 1], sizes = [8, 1], strides = [1, 1]} : vector<8x8xi32> to vector<8x1xi32>
    %237 = vector.broadcast %236 : vector<8x1xi32> to vector<8x128xi32>
    %238 = arith.cmpi eq, %237, %16 : vector<8x128xi32>
    %239 = arith.extui %238 : vector<8x128xi1> to vector<8x128xi32>
    %240 = arith.sitofp %239 : vector<8x128xi32> to vector<8x128xf32>
    %241 = arith.addf %235, %240 : vector<8x128xf32>
    %242 = vector.extract_strided_slice %230 {offsets = [0, 2], sizes = [8, 1], strides = [1, 1]} : vector<8x8xi32> to vector<8x1xi32>
    %243 = vector.broadcast %242 : vector<8x1xi32> to vector<8x128xi32>
    %244 = arith.cmpi eq, %243, %16 : vector<8x128xi32>
    %245 = arith.extui %244 : vector<8x128xi1> to vector<8x128xi32>
    %246 = arith.sitofp %245 : vector<8x128xi32> to vector<8x128xf32>
    %247 = arith.addf %241, %246 : vector<8x128xf32>
    %248 = vector.extract_strided_slice %230 {offsets = [0, 3], sizes = [8, 1], strides = [1, 1]} : vector<8x8xi32> to vector<8x1xi32>
    %249 = vector.broadcast %248 : vector<8x1xi32> to vector<8x128xi32>
    %250 = arith.cmpi eq, %249, %16 : vector<8x128xi32>
    %251 = arith.extui %250 : vector<8x128xi1> to vector<8x128xi32>
    %252 = arith.sitofp %251 : vector<8x128xi32> to vector<8x128xf32>
    %253 = arith.addf %247, %252 : vector<8x128xf32>
    %254 = vector.extract_strided_slice %230 {offsets = [0, 4], sizes = [8, 1], strides = [1, 1]} : vector<8x8xi32> to vector<8x1xi32>
    %255 = vector.broadcast %254 : vector<8x1xi32> to vector<8x128xi32>
    %256 = arith.cmpi eq, %255, %16 : vector<8x128xi32>
    %257 = arith.extui %256 : vector<8x128xi1> to vector<8x128xi32>
    %258 = arith.sitofp %257 : vector<8x128xi32> to vector<8x128xf32>
    %259 = arith.addf %253, %258 : vector<8x128xf32>
    %260 = vector.extract_strided_slice %230 {offsets = [0, 5], sizes = [8, 1], strides = [1, 1]} : vector<8x8xi32> to vector<8x1xi32>
    %261 = vector.broadcast %260 : vector<8x1xi32> to vector<8x128xi32>
    %262 = arith.cmpi eq, %261, %16 : vector<8x128xi32>
    %263 = arith.extui %262 : vector<8x128xi1> to vector<8x128xi32>
    %264 = arith.sitofp %263 : vector<8x128xi32> to vector<8x128xf32>
    %265 = arith.addf %259, %264 : vector<8x128xf32>
    %266 = vector.extract_strided_slice %230 {offsets = [0, 6], sizes = [8, 1], strides = [1, 1]} : vector<8x8xi32> to vector<8x1xi32>
    %267 = vector.broadcast %266 : vector<8x1xi32> to vector<8x128xi32>
    %268 = arith.cmpi eq, %267, %16 : vector<8x128xi32>
    %269 = arith.extui %268 : vector<8x128xi1> to vector<8x128xi32>
    %270 = arith.sitofp %269 : vector<8x128xi32> to vector<8x128xf32>
    %271 = arith.addf %265, %270 : vector<8x128xf32>
    %272 = vector.extract_strided_slice %230 {offsets = [0, 7], sizes = [8, 1], strides = [1, 1]} : vector<8x8xi32> to vector<8x1xi32>
    %273 = vector.broadcast %272 : vector<8x1xi32> to vector<8x128xi32>
    %274 = arith.cmpi eq, %273, %16 : vector<8x128xi32>
    %275 = arith.extui %274 : vector<8x128xi1> to vector<8x128xi32>
    %276 = arith.sitofp %275 : vector<8x128xi32> to vector<8x128xf32>
    %277 = arith.addf %271, %276 : vector<8x128xf32>
    %278 = arith.truncf %277 : vector<8x128xf32> to vector<8x128xbf16>
    %c512 = arith.constant 512 : index
    %c0_16 = arith.constant 0 : index
    %279 = vector.load %arg3[%c512, %c0_16] : memref<1024x128xbf16, #tpu.memory_space<vmem>>, vector<128x128xbf16>
    %cst_17 = arith.constant dense<0.000000e+00> : vector<8x128xf32>
    %280 = tpu.matmul %278, %279, %cst_17 {dimension_numbers = #tpu.dot_dimension_numbers<[1], [0], [0], [1], [0, 0, 1, 1], [], []>} : vector<8x128xbf16>, vector<128x128xbf16>, vector<8x128xf32> -> vector<8x128xf32>
    %281 = arith.addf %228, %280 : vector<8x128xf32>
    %c640_i32 = arith.constant 640 : i32
    %282 = vector.broadcast %c640_i32 : i32 to vector<8x8xi32>
    %283 = arith.subi %0, %282 : vector<8x8xi32>
    %284 = vector.extract_strided_slice %283 {offsets = [0, 0], sizes = [8, 1], strides = [1, 1]} : vector<8x8xi32> to vector<8x1xi32>
    %285 = vector.broadcast %284 : vector<8x1xi32> to vector<8x128xi32>
    %286 = arith.cmpi eq, %285, %16 : vector<8x128xi32>
    %287 = arith.extui %286 : vector<8x128xi1> to vector<8x128xi32>
    %288 = arith.sitofp %287 : vector<8x128xi32> to vector<8x128xf32>
    %289 = vector.extract_strided_slice %283 {offsets = [0, 1], sizes = [8, 1], strides = [1, 1]} : vector<8x8xi32> to vector<8x1xi32>
    %290 = vector.broadcast %289 : vector<8x1xi32> to vector<8x128xi32>
    %291 = arith.cmpi eq, %290, %16 : vector<8x128xi32>
    %292 = arith.extui %291 : vector<8x128xi1> to vector<8x128xi32>
    %293 = arith.sitofp %292 : vector<8x128xi32> to vector<8x128xf32>
    %294 = arith.addf %288, %293 : vector<8x128xf32>
    %295 = vector.extract_strided_slice %283 {offsets = [0, 2], sizes = [8, 1], strides = [1, 1]} : vector<8x8xi32> to vector<8x1xi32>
    %296 = vector.broadcast %295 : vector<8x1xi32> to vector<8x128xi32>
    %297 = arith.cmpi eq, %296, %16 : vector<8x128xi32>
    %298 = arith.extui %297 : vector<8x128xi1> to vector<8x128xi32>
    %299 = arith.sitofp %298 : vector<8x128xi32> to vector<8x128xf32>
    %300 = arith.addf %294, %299 : vector<8x128xf32>
    %301 = vector.extract_strided_slice %283 {offsets = [0, 3], sizes = [8, 1], strides = [1, 1]} : vector<8x8xi32> to vector<8x1xi32>
    %302 = vector.broadcast %301 : vector<8x1xi32> to vector<8x128xi32>
    %303 = arith.cmpi eq, %302, %16 : vector<8x128xi32>
    %304 = arith.extui %303 : vector<8x128xi1> to vector<8x128xi32>
    %305 = arith.sitofp %304 : vector<8x128xi32> to vector<8x128xf32>
    %306 = arith.addf %300, %305 : vector<8x128xf32>
    %307 = vector.extract_strided_slice %283 {offsets = [0, 4], sizes = [8, 1], strides = [1, 1]} : vector<8x8xi32> to vector<8x1xi32>
    %308 = vector.broadcast %307 : vector<8x1xi32> to vector<8x128xi32>
    %309 = arith.cmpi eq, %308, %16 : vector<8x128xi32>
    %310 = arith.extui %309 : vector<8x128xi1> to vector<8x128xi32>
    %311 = arith.sitofp %310 : vector<8x128xi32> to vector<8x128xf32>
    %312 = arith.addf %306, %311 : vector<8x128xf32>
    %313 = vector.extract_strided_slice %283 {offsets = [0, 5], sizes = [8, 1], strides = [1, 1]} : vector<8x8xi32> to vector<8x1xi32>
    %314 = vector.broadcast %313 : vector<8x1xi32> to vector<8x128xi32>
    %315 = arith.cmpi eq, %314, %16 : vector<8x128xi32>
    %316 = arith.extui %315 : vector<8x128xi1> to vector<8x128xi32>
    %317 = arith.sitofp %316 : vector<8x128xi32> to vector<8x128xf32>
    %318 = arith.addf %312, %317 : vector<8x128xf32>
    %319 = vector.extract_strided_slice %283 {offsets = [0, 6], sizes = [8, 1], strides = [1, 1]} : vector<8x8xi32> to vector<8x1xi32>
    %320 = vector.broadcast %319 : vector<8x1xi32> to vector<8x128xi32>
    %321 = arith.cmpi eq, %320, %16 : vector<8x128xi32>
    %322 = arith.extui %321 : vector<8x128xi1> to vector<8x128xi32>
    %323 = arith.sitofp %322 : vector<8x128xi32> to vector<8x128xf32>
    %324 = arith.addf %318, %323 : vector<8x128xf32>
    %325 = vector.extract_strided_slice %283 {offsets = [0, 7], sizes = [8, 1], strides = [1, 1]} : vector<8x8xi32> to vector<8x1xi32>
    %326 = vector.broadcast %325 : vector<8x1xi32> to vector<8x128xi32>
    %327 = arith.cmpi eq, %326, %16 : vector<8x128xi32>
    %328 = arith.extui %327 : vector<8x128xi1> to vector<8x128xi32>
    %329 = arith.sitofp %328 : vector<8x128xi32> to vector<8x128xf32>
    %330 = arith.addf %324, %329 : vector<8x128xf32>
    %331 = arith.truncf %330 : vector<8x128xf32> to vector<8x128xbf16>
    %c640 = arith.constant 640 : index
    %c0_18 = arith.constant 0 : index
    %332 = vector.load %arg3[%c640, %c0_18] : memref<1024x128xbf16, #tpu.memory_space<vmem>>, vector<128x128xbf16>
    %cst_19 = arith.constant dense<0.000000e+00> : vector<8x128xf32>
    %333 = tpu.matmul %331, %332, %cst_19 {dimension_numbers = #tpu.dot_dimension_numbers<[1], [0], [0], [1], [0, 0, 1, 1], [], []>} : vector<8x128xbf16>, vector<128x128xbf16>, vector<8x128xf32> -> vector<8x128xf32>
    %334 = arith.addf %281, %333 : vector<8x128xf32>
    %c768_i32 = arith.constant 768 : i32
    %335 = vector.broadcast %c768_i32 : i32 to vector<8x8xi32>
    %336 = arith.subi %0, %335 : vector<8x8xi32>
    %337 = vector.extract_strided_slice %336 {offsets = [0, 0], sizes = [8, 1], strides = [1, 1]} : vector<8x8xi32> to vector<8x1xi32>
    %338 = vector.broadcast %337 : vector<8x1xi32> to vector<8x128xi32>
    %339 = arith.cmpi eq, %338, %16 : vector<8x128xi32>
    %340 = arith.extui %339 : vector<8x128xi1> to vector<8x128xi32>
    %341 = arith.sitofp %340 : vector<8x128xi32> to vector<8x128xf32>
    %342 = vector.extract_strided_slice %336 {offsets = [0, 1], sizes = [8, 1], strides = [1, 1]} : vector<8x8xi32> to vector<8x1xi32>
    %343 = vector.broadcast %342 : vector<8x1xi32> to vector<8x128xi32>
    %344 = arith.cmpi eq, %343, %16 : vector<8x128xi32>
    %345 = arith.extui %344 : vector<8x128xi1> to vector<8x128xi32>
    %346 = arith.sitofp %345 : vector<8x128xi32> to vector<8x128xf32>
    %347 = arith.addf %341, %346 : vector<8x128xf32>
    %348 = vector.extract_strided_slice %336 {offsets = [0, 2], sizes = [8, 1], strides = [1, 1]} : vector<8x8xi32> to vector<8x1xi32>
    %349 = vector.broadcast %348 : vector<8x1xi32> to vector<8x128xi32>
    %350 = arith.cmpi eq, %349, %16 : vector<8x128xi32>
    %351 = arith.extui %350 : vector<8x128xi1> to vector<8x128xi32>
    %352 = arith.sitofp %351 : vector<8x128xi32> to vector<8x128xf32>
    %353 = arith.addf %347, %352 : vector<8x128xf32>
    %354 = vector.extract_strided_slice %336 {offsets = [0, 3], sizes = [8, 1], strides = [1, 1]} : vector<8x8xi32> to vector<8x1xi32>
    %355 = vector.broadcast %354 : vector<8x1xi32> to vector<8x128xi32>
    %356 = arith.cmpi eq, %355, %16 : vector<8x128xi32>
    %357 = arith.extui %356 : vector<8x128xi1> to vector<8x128xi32>
    %358 = arith.sitofp %357 : vector<8x128xi32> to vector<8x128xf32>
    %359 = arith.addf %353, %358 : vector<8x128xf32>
    %360 = vector.extract_strided_slice %336 {offsets = [0, 4], sizes = [8, 1], strides = [1, 1]} : vector<8x8xi32> to vector<8x1xi32>
    %361 = vector.broadcast %360 : vector<8x1xi32> to vector<8x128xi32>
    %362 = arith.cmpi eq, %361, %16 : vector<8x128xi32>
    %363 = arith.extui %362 : vector<8x128xi1> to vector<8x128xi32>
    %364 = arith.sitofp %363 : vector<8x128xi32> to vector<8x128xf32>
    %365 = arith.addf %359, %364 : vector<8x128xf32>
    %366 = vector.extract_strided_slice %336 {offsets = [0, 5], sizes = [8, 1], strides = [1, 1]} : vector<8x8xi32> to vector<8x1xi32>
    %367 = vector.broadcast %366 : vector<8x1xi32> to vector<8x128xi32>
    %368 = arith.cmpi eq, %367, %16 : vector<8x128xi32>
    %369 = arith.extui %368 : vector<8x128xi1> to vector<8x128xi32>
    %370 = arith.sitofp %369 : vector<8x128xi32> to vector<8x128xf32>
    %371 = arith.addf %365, %370 : vector<8x128xf32>
    %372 = vector.extract_strided_slice %336 {offsets = [0, 6], sizes = [8, 1], strides = [1, 1]} : vector<8x8xi32> to vector<8x1xi32>
    %373 = vector.broadcast %372 : vector<8x1xi32> to vector<8x128xi32>
    %374 = arith.cmpi eq, %373, %16 : vector<8x128xi32>
    %375 = arith.extui %374 : vector<8x128xi1> to vector<8x128xi32>
    %376 = arith.sitofp %375 : vector<8x128xi32> to vector<8x128xf32>
    %377 = arith.addf %371, %376 : vector<8x128xf32>
    %378 = vector.extract_strided_slice %336 {offsets = [0, 7], sizes = [8, 1], strides = [1, 1]} : vector<8x8xi32> to vector<8x1xi32>
    %379 = vector.broadcast %378 : vector<8x1xi32> to vector<8x128xi32>
    %380 = arith.cmpi eq, %379, %16 : vector<8x128xi32>
    %381 = arith.extui %380 : vector<8x128xi1> to vector<8x128xi32>
    %382 = arith.sitofp %381 : vector<8x128xi32> to vector<8x128xf32>
    %383 = arith.addf %377, %382 : vector<8x128xf32>
    %384 = arith.truncf %383 : vector<8x128xf32> to vector<8x128xbf16>
    %c768 = arith.constant 768 : index
    %c0_20 = arith.constant 0 : index
    %385 = vector.load %arg3[%c768, %c0_20] : memref<1024x128xbf16, #tpu.memory_space<vmem>>, vector<128x128xbf16>
    %cst_21 = arith.constant dense<0.000000e+00> : vector<8x128xf32>
    %386 = tpu.matmul %384, %385, %cst_21 {dimension_numbers = #tpu.dot_dimension_numbers<[1], [0], [0], [1], [0, 0, 1, 1], [], []>} : vector<8x128xbf16>, vector<128x128xbf16>, vector<8x128xf32> -> vector<8x128xf32>
    %387 = arith.addf %334, %386 : vector<8x128xf32>
    %c896_i32 = arith.constant 896 : i32
    %388 = vector.broadcast %c896_i32 : i32 to vector<8x8xi32>
    %389 = arith.subi %0, %388 : vector<8x8xi32>
    %390 = vector.extract_strided_slice %389 {offsets = [0, 0], sizes = [8, 1], strides = [1, 1]} : vector<8x8xi32> to vector<8x1xi32>
    %391 = vector.broadcast %390 : vector<8x1xi32> to vector<8x128xi32>
    %392 = arith.cmpi eq, %391, %16 : vector<8x128xi32>
    %393 = arith.extui %392 : vector<8x128xi1> to vector<8x128xi32>
    %394 = arith.sitofp %393 : vector<8x128xi32> to vector<8x128xf32>
    %395 = vector.extract_strided_slice %389 {offsets = [0, 1], sizes = [8, 1], strides = [1, 1]} : vector<8x8xi32> to vector<8x1xi32>
    %396 = vector.broadcast %395 : vector<8x1xi32> to vector<8x128xi32>
    %397 = arith.cmpi eq, %396, %16 : vector<8x128xi32>
    %398 = arith.extui %397 : vector<8x128xi1> to vector<8x128xi32>
    %399 = arith.sitofp %398 : vector<8x128xi32> to vector<8x128xf32>
    %400 = arith.addf %394, %399 : vector<8x128xf32>
    %401 = vector.extract_strided_slice %389 {offsets = [0, 2], sizes = [8, 1], strides = [1, 1]} : vector<8x8xi32> to vector<8x1xi32>
    %402 = vector.broadcast %401 : vector<8x1xi32> to vector<8x128xi32>
    %403 = arith.cmpi eq, %402, %16 : vector<8x128xi32>
    %404 = arith.extui %403 : vector<8x128xi1> to vector<8x128xi32>
    %405 = arith.sitofp %404 : vector<8x128xi32> to vector<8x128xf32>
    %406 = arith.addf %400, %405 : vector<8x128xf32>
    %407 = vector.extract_strided_slice %389 {offsets = [0, 3], sizes = [8, 1], strides = [1, 1]} : vector<8x8xi32> to vector<8x1xi32>
    %408 = vector.broadcast %407 : vector<8x1xi32> to vector<8x128xi32>
    %409 = arith.cmpi eq, %408, %16 : vector<8x128xi32>
    %410 = arith.extui %409 : vector<8x128xi1> to vector<8x128xi32>
    %411 = arith.sitofp %410 : vector<8x128xi32> to vector<8x128xf32>
    %412 = arith.addf %406, %411 : vector<8x128xf32>
    %413 = vector.extract_strided_slice %389 {offsets = [0, 4], sizes = [8, 1], strides = [1, 1]} : vector<8x8xi32> to vector<8x1xi32>
    %414 = vector.broadcast %413 : vector<8x1xi32> to vector<8x128xi32>
    %415 = arith.cmpi eq, %414, %16 : vector<8x128xi32>
    %416 = arith.extui %415 : vector<8x128xi1> to vector<8x128xi32>
    %417 = arith.sitofp %416 : vector<8x128xi32> to vector<8x128xf32>
    %418 = arith.addf %412, %417 : vector<8x128xf32>
    %419 = vector.extract_strided_slice %389 {offsets = [0, 5], sizes = [8, 1], strides = [1, 1]} : vector<8x8xi32> to vector<8x1xi32>
    %420 = vector.broadcast %419 : vector<8x1xi32> to vector<8x128xi32>
    %421 = arith.cmpi eq, %420, %16 : vector<8x128xi32>
    %422 = arith.extui %421 : vector<8x128xi1> to vector<8x128xi32>
    %423 = arith.sitofp %422 : vector<8x128xi32> to vector<8x128xf32>
    %424 = arith.addf %418, %423 : vector<8x128xf32>
    %425 = vector.extract_strided_slice %389 {offsets = [0, 6], sizes = [8, 1], strides = [1, 1]} : vector<8x8xi32> to vector<8x1xi32>
    %426 = vector.broadcast %425 : vector<8x1xi32> to vector<8x128xi32>
    %427 = arith.cmpi eq, %426, %16 : vector<8x128xi32>
    %428 = arith.extui %427 : vector<8x128xi1> to vector<8x128xi32>
    %429 = arith.sitofp %428 : vector<8x128xi32> to vector<8x128xf32>
    %430 = arith.addf %424, %429 : vector<8x128xf32>
    %431 = vector.extract_strided_slice %389 {offsets = [0, 7], sizes = [8, 1], strides = [1, 1]} : vector<8x8xi32> to vector<8x1xi32>
    %432 = vector.broadcast %431 : vector<8x1xi32> to vector<8x128xi32>
    %433 = arith.cmpi eq, %432, %16 : vector<8x128xi32>
    %434 = arith.extui %433 : vector<8x128xi1> to vector<8x128xi32>
    %435 = arith.sitofp %434 : vector<8x128xi32> to vector<8x128xf32>
    %436 = arith.addf %430, %435 : vector<8x128xf32>
    %437 = arith.truncf %436 : vector<8x128xf32> to vector<8x128xbf16>
    %c896 = arith.constant 896 : index
    %c0_22 = arith.constant 0 : index
    %438 = vector.load %arg3[%c896, %c0_22] : memref<1024x128xbf16, #tpu.memory_space<vmem>>, vector<128x128xbf16>
    %cst_23 = arith.constant dense<0.000000e+00> : vector<8x128xf32>
    %439 = tpu.matmul %437, %438, %cst_23 {dimension_numbers = #tpu.dot_dimension_numbers<[1], [0], [0], [1], [0, 0, 1, 1], [], []>} : vector<8x128xbf16>, vector<128x128xbf16>, vector<8x128xf32> -> vector<8x128xf32>
    %440 = arith.addf %387, %439 : vector<8x128xf32>
    %cst_24 = arith.constant 0.000000e+00 : f32
    %441 = vector.broadcast %cst_24 : f32 to vector<8x128xf32>
    %442 = arith.maximumf %440, %441 : vector<8x128xf32>
    %443 = arith.truncf %442 : vector<8x128xf32> to vector<8x128xbf16>
    %c0_25 = arith.constant 0 : index
    %c0_26 = arith.constant 0 : index
    %444 = vector.load %arg6[%c0_25, %c0_26] : memref<128x64xbf16, #tpu.memory_space<vmem>>, vector<128x64xbf16>
    %cst_27 = arith.constant dense<0.000000e+00> : vector<8x64xf32>
    %445 = tpu.matmul %443, %444, %cst_27 {dimension_numbers = #tpu.dot_dimension_numbers<[1], [0], [0], [1], [0, 0, 1, 1], [], []>} : vector<8x128xbf16>, vector<128x64xbf16>, vector<8x64xf32> -> vector<8x64xf32>
    %c0_28 = arith.constant 0 : index
    %c0_29 = arith.constant 0 : index
    %446 = vector.load %arg7[%c0_28, %c0_29] : memref<1x64xf32, #tpu.memory_space<vmem>>, vector<1x64xf32>
    %447 = vector.broadcast %446 : vector<1x64xf32> to vector<8x64xf32>
    %448 = arith.addf %445, %447 : vector<8x64xf32>
    %cst_30 = arith.constant 0.000000e+00 : f32
    %449 = vector.broadcast %cst_30 : f32 to vector<8x64xf32>
    %450 = arith.maximumf %448, %449 : vector<8x64xf32>
    %451 = arith.truncf %450 : vector<8x64xf32> to vector<8x64xbf16>
    %c0_31 = arith.constant 0 : index
    %c0_32 = arith.constant 0 : index
    %452 = vector.load %arg8[%c0_31, %c0_32] : memref<64x128xbf16, #tpu.memory_space<vmem>>, vector<64x128xbf16>
    %cst_33 = arith.constant dense<0.000000e+00> : vector<8x128xf32>
    %453 = tpu.matmul %451, %452, %cst_33 {dimension_numbers = #tpu.dot_dimension_numbers<[1], [0], [0], [1], [0, 0, 1, 1], [], []>} : vector<8x64xbf16>, vector<64x128xbf16>, vector<8x128xf32> -> vector<8x128xf32>
    %c0_34 = arith.constant 0 : index
    %c0_35 = arith.constant 0 : index
    %454 = vector.load %arg9[%c0_34, %c0_35] : memref<1x128xf32, #tpu.memory_space<vmem>>, vector<1x128xf32>
    %455 = vector.broadcast %454 : vector<1x128xf32> to vector<8x128xf32>
    %456 = arith.addf %453, %455 : vector<8x128xf32>
    %c0_36 = arith.constant 0 : index
    %c0_37 = arith.constant 0 : index
    %457 = vector.load %arg10[%c0_36, %c0_37] : memref<8x128xf32, #tpu.memory_space<vmem>>, vector<8x128xf32>
    tpu.vector_store %arg10[%c0_36, %c0_37], %456 {strides = array<i32>} : memref<8x128xf32, #tpu.memory_space<vmem>>, vector<8x128xf32>,
    return
  }
  func.func @transform_0(%arg0: i32) -> (i32, i32) {
    %c0_i32 = arith.constant 0 : i32
    %c0_i32_0 = arith.constant 0 : i32
    return %arg0, %c0_i32 : i32, i32
  }
  func.func @transform_1(%arg0: i32) -> (i32, i32) {
    %c0_i32 = arith.constant 0 : i32
    %c0_i32_0 = arith.constant 0 : i32
    return %arg0, %c0_i32 : i32, i32
  }
  func.func @transform_2(%arg0: i32) -> (i32, i32) {
    %c0_i32 = arith.constant 0 : i32
    %c0_i32_0 = arith.constant 0 : i32
    %c0_i32_1 = arith.constant 0 : i32
    return %c0_i32, %c0_i32_0 : i32, i32
  }
  func.func @transform_3(%arg0: i32) -> (i32, i32) {
    %c0_i32 = arith.constant 0 : i32
    %c0_i32_0 = arith.constant 0 : i32
    %c0_i32_1 = arith.constant 0 : i32
    return %c0_i32, %c0_i32_0 : i32, i32
  }
  func.func @transform_4(%arg0: i32) -> (i32, i32) {
    %c0_i32 = arith.constant 0 : i32
    %c0_i32_0 = arith.constant 0 : i32
    %c0_i32_1 = arith.constant 0 : i32
    return %c0_i32, %c0_i32_0 : i32, i32
  }
  func.func @transform_5(%arg0: i32) -> (i32, i32) {
    %c0_i32 = arith.constant 0 : i32
    %c0_i32_0 = arith.constant 0 : i32
    %c0_i32_1 = arith.constant 0 : i32
    return %c0_i32, %c0_i32_0 : i32, i32
  }
  func.func @transform_6(%arg0: i32) -> (i32, i32) {
    %c0_i32 = arith.constant 0 : i32
    %c0_i32_0 = arith.constant 0 : i32
    %c0_i32_1 = arith.constant 0 : i32
    return %c0_i32, %c0_i32_0 : i32, i32
  }
  func.func @transform_7(%arg0: i32) -> (i32, i32) {
    %c0_i32 = arith.constant 0 : i32
    %c0_i32_0 = arith.constant 0 : i32
    %c0_i32_1 = arith.constant 0 : i32
    return %c0_i32, %c0_i32_0 : i32, i32
  }
  func.func @transform_8(%arg0: i32) -> (i32, i32) {
    %c0_i32 = arith.constant 0 : i32
    %c0_i32_0 = arith.constant 0 : i32
    %c0_i32_1 = arith.constant 0 : i32
    return %c0_i32, %c0_i32_0 : i32, i32
  }
  func.func @transform_9(%arg0: i32) -> (i32, i32) {
    %c0_i32 = arith.constant 0 : i32
    %c0_i32_0 = arith.constant 0 : i32
    return %arg0, %c0_i32 : i32, i32
  }
}

</mosaic_0001>

<llo_original>
// kernel: tpu_custom_call.1
$region0: #{tpu_custom_call.1}
  #allocation0 [shape = 'u32[]', space=smem, size = 0x4, offset = 0x4, fixed_abs, tag = 'smem constant byte address 0x4 - core index']
  #allocation1 [shape = 'u32[144,128]{1,0:T(1,128)}', space=vmem, size = 0x12000, scoped, tag = 'internal scratch']
  %s0 = inlined_call_operand.vmem [shape: s32[16,8], index: 0, kind: input, shape index: {}]
  %s1 = inlined_call_operand.vmem [shape: f32[16,2], index: 1, kind: input, shape index: {}]
  %s2 = inlined_call_operand.hbm [shape: bf16[1024,128], index: 2, kind: input, shape index: {}]
  %s3 = inlined_call_operand.vmem [shape: f32[2,128], index: 3, kind: input, shape index: {}]
  %s4 = inlined_call_operand.vmem [shape: f32[1,128], index: 4, kind: input, shape index: {}]
  %s5 = inlined_call_operand.vmem [shape: bf16[128,64], index: 5, kind: input, shape index: {}]
  %s6 = inlined_call_operand.vmem [shape: f32[1,64], index: 6, kind: input, shape index: {}]
  %s7 = inlined_call_operand.vmem [shape: bf16[64,128], index: 7, kind: input, shape index: {}]
  %s8 = inlined_call_operand.vmem [shape: f32[1,128], index: 8, kind: input, shape index: {}]
  %s9 = inlined_call_operand.hbm [shape: f32[16,128], index: 9, kind: output, shape index: {}]
  %s10 = sld [smem:[#allocation0]]
  $region73: #{tpu_custom_call.1} parent=0
    _
  %s12 = ssub.s32 1, %s10
  %s13 = scalar_select 0, %s12, %s10
  $region1: #{tpu_custom_call.1} parent=0
    #allocation2 [shape = 'u8[262144]{0}', space=vmem, size = 0x40000, scoped, tag = 'input window, operand 2, single buffered']
    #allocation3 [shape = 's32[2]{0}', space=sflag, size = 0x8, scoped, tag = 'scoped memory for tpu_custom_call.1']
    #allocation4 [shape = 's32[2]{0}', space=sflag, size = 0x8, scoped, tag = 'scoped memory for tpu_custom_call.1']
    #allocation5 [shape = 'u8[8192]{0}', space=vmem, size = 0x2000, scoped, tag = 'output window, operand 0']
    %14 = vsyncpa [#allocation3], 0
    %15 = vsyncpa [#allocation4], 0
    %s16 = scalar_lea.sflag [#allocation4], 1
    %17 = vsyncpa %s16, 0
    loop: start=0, step=1, limit=4
    $region2: #{tpu_custom_call.1} parent=1 // loop_pre_header
      _
    $region3: #{tpu_custom_call.1} parent=1 // loop_header
      %s19 = sphi 0, %s23
      %p20 = scmp.ge.s32.totalorder %s19, 4
      %s29 = sphi 0, %s31
      %s32 = sphi 0, %s29
      %s33 = sphi 0, %s32
      %s49 = sphi 0, %s33
      %s55 = sphi 0, %s57
      %s58 = sphi 0, %s55
      %s59 = sphi 0, %s58
      %s75 = sphi 0, %s59
      %s79 = sphi 0, %s79
      %s81 = sphi 0, %s79
      %s82 = sphi 0, %s81
      %s96 = sphi 0, %s82
      %s100 = sphi 0, %s100
      %s102 = sphi 0, %s100
      %s103 = sphi 0, %s102
      %s117 = sphi 0, %s103
      %s121 = sphi 0, %s121
      %s123 = sphi 0, %s121
      %s124 = sphi 0, %s123
      %s138 = sphi 0, %s124
      %s142 = sphi 0, %s142
      %s144 = sphi 0, %s142
      %s145 = sphi 0, %s144
      %s159 = sphi 0, %s145
      %s163 = sphi 0, %s163
      %s165 = sphi 0, %s163
      %s166 = sphi 0, %s165
      %s180 = sphi 0, %s166
      %s184 = sphi 0, %s184
      %s186 = sphi 0, %s184
      %s187 = sphi 0, %s186
      %s201 = sphi 0, %s187
      %s205 = sphi 0, %s205
      %s207 = sphi 0, %s205
      %s208 = sphi 0, %s207
      %s222 = sphi 0, %s208
      %s228 = sphi 0, %s230
      %s231 = sphi 0, %s228
      %s232 = sphi 0, %s231
      %s248 = sphi 0, %s232
    $region4: #{tpu_custom_call.1} parent=1 // loop_header_branch
      %22 = sbr.rel (%p20) target = $region8
    $region5: #{tpu_custom_call.1} parent=1 // loop_body
      %s24 = ssub.s32 %s19, 1
      %s25 = ssub.s32 %s19, 2
      %s26 = sadd.s32 %s19, 1
      %s27 = ssub.s32 %s19, %s26
      %p28 = scmp.eq.s32.totalorder %s27, 0
      %s30 = sadd.s32 %s29, 1
      %s31 = scalar_select %p28, %s29, %s30
      %p34 = pneg %p28
      %p35 = scmp.eq.s32.totalorder %s19, 1
      %p36 = por %p34, %p35
      %p37 = scmp.ne.s32.totalorder %s29, %s32
      %p38 = scmp.eq.s32.totalorder %s19, 0
      %p39 = por %p37, %p38
      %p40 = scmp.ne.s32.totalorder %s29, %s32
      %p41 = scmp.eq.s32.totalorder %s24, 1
      %p42 = por %p40, %p41
      %p43 = scmp.ne.s32.totalorder %s32, %s33
      %p44 = scmp.eq.s32.totalorder %s24, 0
      %p45 = por %p43, %p44
      %p46 = scmp.ne.s32.totalorder %s32, %s33
      %p47 = scmp.eq.s32.totalorder %s25, 1
      %p48 = por %p46, %p47
      %p50 = scmp.ne.s32.totalorder %s33, %s49
      %p51 = scmp.eq.s32.totalorder %s25, 0
      %p52 = por %p50, %p51
      %s53 = ssub.s32 %s19, %s26
      %p54 = scmp.eq.s32.totalorder %s53, 0
      %s56 = sadd.s32 %s55, 1
      %s57 = scalar_select %p54, %s55, %s56
      %p60 = pneg %p54
      %p61 = scmp.eq.s32.totalorder %s19, 1
      %p62 = por %p60, %p61
      %p63 = scmp.ne.s32.totalorder %s55, %s58
      %p64 = scmp.eq.s32.totalorder %s19, 0
      %p65 = por %p63, %p64
      %p66 = scmp.ne.s32.totalorder %s55, %s58
      %p67 = scmp.eq.s32.totalorder %s24, 1
      %p68 = por %p66, %p67
      %p69 = scmp.ne.s32.totalorder %s58, %s59
      %p70 = scmp.eq.s32.totalorder %s24, 0
      %p71 = por %p69, %p70
      %p72 = scmp.ne.s32.totalorder %s58, %s59
      %p73 = scmp.eq.s32.totalorder %s25, 1
      %p74 = por %p72, %p73
      %p76 = scmp.ne.s32.totalorder %s59, %s75
      %p77 = scmp.eq.s32.totalorder %s25, 0
      %p78 = por %p76, %p77
      %s80 = sadd.s32 %s79, 1
      %p83 = scmp.eq.s32.totalorder %s19, 1
      %p84 = scmp.ne.s32.totalorder %s79, %s81
      %p85 = scmp.eq.s32.totalorder %s19, 0
      %p86 = por %p84, %p85
      %p87 = scmp.ne.s32.totalorder %s79, %s81
      %p88 = scmp.eq.s32.totalorder %s24, 1
      %p89 = por %p87, %p88
      %p90 = scmp.ne.s32.totalorder %s81, %s82
      %p91 = scmp.eq.s32.totalorder %s24, 0
      %p92 = por %p90, %p91
      %p93 = scmp.ne.s32.totalorder %s81, %s82
      %p94 = scmp.eq.s32.totalorder %s25, 1
      %p95 = por %p93, %p94
      %p97 = scmp.ne.s32.totalorder %s82, %s96
      %p98 = scmp.eq.s32.totalorder %s25, 0
      %p99 = por %p97, %p98
      %s101 = sadd.s32 %s100, 1
      %p104 = scmp.eq.s32.totalorder %s19, 1
      %p105 = scmp.ne.s32.totalorder %s100, %s102
      %p106 = scmp.eq.s32.totalorder %s19, 0
      %p107 = por %p105, %p106
      %p108 = scmp.ne.s32.totalorder %s100, %s102
      %p109 = scmp.eq.s32.totalorder %s24, 1
      %p110 = por %p108, %p109
      %p111 = scmp.ne.s32.totalorder %s102, %s103
      %p112 = scmp.eq.s32.totalorder %s24, 0
      %p113 = por %p111, %p112
      %p114 = scmp.ne.s32.totalorder %s102, %s103
      %p115 = scmp.eq.s32.totalorder %s25, 1
      %p116 = por %p114, %p115
      %p118 = scmp.ne.s32.totalorder %s103, %s117
      %p119 = scmp.eq.s32.totalorder %s25, 0
      %p120 = por %p118, %p119
      %s122 = sadd.s32 %s121, 1
      %p125 = scmp.eq.s32.totalorder %s19, 1
      %p126 = scmp.ne.s32.totalorder %s121, %s123
      %p127 = scmp.eq.s32.totalorder %s19, 0
      %p128 = por %p126, %p127
      %p129 = scmp.ne.s32.totalorder %s121, %s123
      %p130 = scmp.eq.s32.totalorder %s24, 1
      %p131 = por %p129, %p130
      %p132 = scmp.ne.s32.totalorder %s123, %s124
      %p133 = scmp.eq.s32.totalorder %s24, 0
      %p134 = por %p132, %p133
      %p135 = scmp.ne.s32.totalorder %s123, %s124
      %p136 = scmp.eq.s32.totalorder %s25, 1
      %p137 = por %p135, %p136
      %p139 = scmp.ne.s32.totalorder %s124, %s138
      %p140 = scmp.eq.s32.totalorder %s25, 0
      %p141 = por %p139, %p140
      %s143 = sadd.s32 %s142, 1
      %p146 = scmp.eq.s32.totalorder %s19, 1
      %p147 = scmp.ne.s32.totalorder %s142, %s144
      %p148 = scmp.eq.s32.totalorder %s19, 0
      %p149 = por %p147, %p148
      %p150 = scmp.ne.s32.totalorder %s142, %s144
      %p151 = scmp.eq.s32.totalorder %s24, 1
      %p152 = por %p150, %p151
      %p153 = scmp.ne.s32.totalorder %s144, %s145
      %p154 = scmp.eq.s32.totalorder %s24, 0
      %p155 = por %p153, %p154
      %p156 = scmp.ne.s32.totalorder %s144, %s145
      %p157 = scmp.eq.s32.totalorder %s25, 1
      %p158 = por %p156, %p157
      %p160 = scmp.ne.s32.totalorder %s145, %s159
      %p161 = scmp.eq.s32.totalorder %s25, 0
      %p162 = por %p160, %p161
      %s164 = sadd.s32 %s163, 1
      %p167 = scmp.eq.s32.totalorder %s19, 1
      %p168 = scmp.ne.s32.totalorder %s163, %s165
      %p169 = scmp.eq.s32.totalorder %s19, 0
      %p170 = por %p168, %p169
      %p171 = scmp.ne.s32.totalorder %s163, %s165
      %p172 = scmp.eq.s32.totalorder %s24, 1
      %p173 = por %p171, %p172
      %p174 = scmp.ne.s32.totalorder %s165, %s166
      %p175 = scmp.eq.s32.totalorder %s24, 0
      %p176 = por %p174, %p175
      %p177 = scmp.ne.s32.totalorder %s165, %s166
      %p178 = scmp.eq.s32.totalorder %s25, 1
      %p179 = por %p177, %p178
      %p181 = scmp.ne.s32.totalorder %s166, %s180
      %p182 = scmp.eq.s32.totalorder %s25, 0
      %p183 = por %p181, %p182
      %s185 = sadd.s32 %s184, 1
      %p188 = scmp.eq.s32.totalorder %s19, 1
      %p189 = scmp.ne.s32.totalorder %s184, %s186
      %p190 = scmp.eq.s32.totalorder %s19, 0
      %p191 = por %p189, %p190
      %p192 = scmp.ne.s32.totalorder %s184, %s186
      %p193 = scmp.eq.s32.totalorder %s24, 1
      %p194 = por %p192, %p193
      %p195 = scmp.ne.s32.totalorder %s186, %s187
      %p196 = scmp.eq.s32.totalorder %s24, 0
      %p197 = por %p195, %p196
      %p198 = scmp.ne.s32.totalorder %s186, %s187
      %p199 = scmp.eq.s32.totalorder %s25, 1
      %p200 = por %p198, %p199
      %p202 = scmp.ne.s32.totalorder %s187, %s201
      %p203 = scmp.eq.s32.totalorder %s25, 0
      %p204 = por %p202, %p203
      %s206 = sadd.s32 %s205, 1
      %p209 = scmp.eq.s32.totalorder %s19, 1
      %p210 = scmp.ne.s32.totalorder %s205, %s207
      %p211 = scmp.eq.s32.totalorder %s19, 0
      %p212 = por %p210, %p211
      %p213 = scmp.ne.s32.totalorder %s205, %s207
      %p214 = scmp.eq.s32.totalorder %s24, 1
      %p215 = por %p213, %p214
      %p216 = scmp.ne.s32.totalorder %s207, %s208
      %p217 = scmp.eq.s32.totalorder %s24, 0
      %p218 = por %p216, %p217
      %p219 = scmp.ne.s32.totalorder %s207, %s208
      %p220 = scmp.eq.s32.totalorder %s25, 1
      %p221 = por %p219, %p220
      %p223 = scmp.ne.s32.totalorder %s208, %s222
      %p224 = scmp.eq.s32.totalorder %s25, 0
      %p225 = por %p223, %p224
      %s226 = ssub.s32 %s19, %s26
      %p227 = scmp.eq.s32.totalorder %s226, 0
      %s229 = sadd.s32 %s228, 1
      %s230 = scalar_select %p227, %s228, %s229
      %p233 = pneg %p227
      %p234 = scmp.eq.s32.totalorder %s19, 1
      %p235 = por %p233, %p234
      %p236 = scmp.ne.s32.totalorder %s228, %s231
      %p237 = scmp.eq.s32.totalorder %s19, 0
      %p238 = por %p236, %p237
      %p239 = scmp.ne.s32.totalorder %s228, %s231
      %p240 = scmp.eq.s32.totalorder %s24, 1
      %p241 = por %p239, %p240
      %p242 = scmp.ne.s32.totalorder %s231, %s232
      %p243 = scmp.eq.s32.totalorder %s24, 0
      %p244 = por %p242, %p243
      %p245 = scmp.ne.s32.totalorder %s231, %s232
      %p246 = scmp.eq.s32.totalorder %s25, 1
      %p247 = por %p245, %p246
      %p249 = scmp.ne.s32.totalorder %s232, %s248
      %p250 = scmp.eq.s32.totalorder %s25, 0
      %p251 = por %p249, %p250
      %p252 = scmp.le.s32.totalorder 1, %s19
      %p253 = scmp.lt.s32.totalorder %s19, 3
      %p254 = pnand %p252, %p253
      %p255 = pneg %p254
      // Predicated region
      $region9: #{tpu_custom_call.1} parent=5 // pred_check
        _
      $region10: #{tpu_custom_call.1} parent=5 // pred_check_branch
        %257 = sbr.rel (%p254) target = $region12
      $region11: #{tpu_custom_call.1} parent=5 // pred_region
        %s258 = ssub.s32 %s19, 1
        // Predicated region
        $region13: #{tpu_custom_call.1} parent=11 // pred_check
          %p259 = pneg %p92
        $region14: #{tpu_custom_call.1} parent=11 // pred_check_branch
          %261 = sbr.rel (%p259) target = $region16
        $region15: #{tpu_custom_call.1} parent=11 // pred_region
          %s263 = ssub.s32 8192, 8192
          %264 = vsyncadd [#allocation3], %s263
          %s265 = sshll.u32 [#allocation2], 4
          %s266 = int_to_ptr.vmem [resolvable:$true] %s265
          %271 = dma.hbm_to_vmem [thread:$0]  %s2, 8192, %s266, [#allocation3], 64, 64, 4
        $region16: #{tpu_custom_call.1} parent=11 // pred_fallthru
          _
        // Predicated region
        $region17: #{tpu_custom_call.1} parent=11 // pred_check
          %p272 = pneg %p113
        $region18: #{tpu_custom_call.1} parent=11 // pred_check_branch
          %274 = sbr.rel (%p272) target = $region20
        $region19: #{tpu_custom_call.1} parent=11 // pred_region
          _
        $region20: #{tpu_custom_call.1} parent=11 // pred_fallthru
          _
        // Predicated region
        $region21: #{tpu_custom_call.1} parent=11 // pred_check
          %p275 = pneg %p134
        $region22: #{tpu_custom_call.1} parent=11 // pred_check_branch
          %277 = sbr.rel (%p275) target = $region24
        $region23: #{tpu_custom_call.1} parent=11 // pred_region
          _
        $region24: #{tpu_custom_call.1} parent=11 // pred_fallthru
          _
        // Predicated region
        $region25: #{tpu_custom_call.1} parent=11 // pred_check
          %p278 = pneg %p155
        $region26: #{tpu_custom_call.1} parent=11 // pred_check_branch
          %280 = sbr.rel (%p278) target = $region28
        $region27: #{tpu_custom_call.1} parent=11 // pred_region
          _
        $region28: #{tpu_custom_call.1} parent=11 // pred_fallthru
          _
        // Predicated region
        $region29: #{tpu_custom_call.1} parent=11 // pred_check
          %p281 = pneg %p176
        $region30: #{tpu_custom_call.1} parent=11 // pred_check_branch
          %283 = sbr.rel (%p281) target = $region32
        $region31: #{tpu_custom_call.1} parent=11 // pred_region
          _
        $region32: #{tpu_custom_call.1} parent=11 // pred_fallthru
          _
        // Predicated region
        $region33: #{tpu_custom_call.1} parent=11 // pred_check
          %p284 = pneg %p197
        $region34: #{tpu_custom_call.1} parent=11 // pred_check_branch
          %286 = sbr.rel (%p284) target = $region36
        $region35: #{tpu_custom_call.1} parent=11 // pred_region
          _
        $region36: #{tpu_custom_call.1} parent=11 // pred_fallthru
          _
        // Predicated region
        $region37: #{tpu_custom_call.1} parent=11 // pred_check
          %p287 = pneg %p218
        $region38: #{tpu_custom_call.1} parent=11 // pred_check_branch
          %289 = sbr.rel (%p287) target = $region40
        $region39: #{tpu_custom_call.1} parent=11 // pred_region
          _
        $region40: #{tpu_custom_call.1} parent=11 // pred_fallthru
          _
      $region12: #{tpu_custom_call.1} parent=5 // pred_fallthru
        _
      %p290 = scmp.lt.s32.totalorder %s19, 2
      // Predicated region
      $region41: #{tpu_custom_call.1} parent=5 // pred_check
        %p291 = pneg %p290
      $region42: #{tpu_custom_call.1} parent=5 // pred_check_branch
        %293 = sbr.rel (%p291) target = $region44
      $region43: #{tpu_custom_call.1} parent=5 // pred_region
        // Predicated region
        $region45: #{tpu_custom_call.1} parent=43 // pred_check
          %p294 = pneg %p39
        $region46: #{tpu_custom_call.1} parent=43 // pred_check_branch
          %296 = sbr.rel (%p294) target = $region48
        $region47: #{tpu_custom_call.1} parent=43 // pred_region
          %p297 = scmp.lt.s32.totalorder %s19, 1
          %s298 = scalar_select %p297, %s19, 1
          %s299 = smul.addr %s298, 8
          %s300 = scalar_lea.vmem %s0, %s299
        $region48: #{tpu_custom_call.1} parent=43 // pred_fallthru
          _
        // Predicated region
        $region49: #{tpu_custom_call.1} parent=43 // pred_check
          %p301 = pneg %p65
        $region50: #{tpu_custom_call.1} parent=43 // pred_check_branch
          %303 = sbr.rel (%p301) target = $region52
        $region51: #{tpu_custom_call.1} parent=43 // pred_region
          %p304 = scmp.lt.s32.totalorder %s19, 1
          %s305 = scalar_select %p304, %s19, 1
          %s306 = smul.addr %s305, 8
          %s307 = scalar_lea.vmem %s1, %s306
        $region52: #{tpu_custom_call.1} parent=43 // pred_fallthru
          _
      $region44: #{tpu_custom_call.1} parent=5 // pred_fallthru
        _
      %p308 = scmp.le.s32.totalorder 1, %s19
      %p309 = scmp.lt.s32.totalorder %s19, 3
      %p310 = pnand %p308, %p309
      %p311 = pneg %p310
      // Predicated region
      $region53: #{tpu_custom_call.1} parent=5 // pred_check
        _
      $region54: #{tpu_custom_call.1} parent=5 // pred_check_branch
        %313 = sbr.rel (%p310) target = $region56
      $region55: #{tpu_custom_call.1} parent=5 // pred_region
        %s314 = ssub.s32 %s19, 1
        // Predicated region
        $region57: #{tpu_custom_call.1} parent=55 // pred_check
          %p315 = pneg %p92
        $region58: #{tpu_custom_call.1} parent=55 // pred_check_branch
          %317 = sbr.rel (%p315) target = $region60
        $region59: #{tpu_custom_call.1} parent=55 // pred_region
          %318 = dma.done [#allocation3], 8192
        $region60: #{tpu_custom_call.1} parent=55 // pred_fallthru
          _
        %p319 = scmp.lt.s32.totalorder %s24, 1
        %s320 = scalar_select %p319, %s24, 1
        %s321 = smul.addr %s320, 8
        %s322 = scalar_lea.vmem %s0, %s321
        %p323 = pneg %p45
        %p324 = pneg %p42
        %p325 = scmp.lt.s32.totalorder %s24, 1
        %s326 = scalar_select %p325, %s24, 1
        %s327 = smul.addr %s326, 8
        %s328 = scalar_lea.vmem %s1, %s327
        %p329 = pneg %p71
        %p330 = pneg %p68
        %p331 = pneg %p92
        %p332 = pneg %p89
        %p333 = pneg %p113
        %p334 = pneg %p110
        %p335 = pneg %p134
        %p336 = pneg %p131
        %p337 = pneg %p155
        %p338 = pneg %p152
        %p339 = pneg %p176
        %p340 = pneg %p173
        %p341 = pneg %p197
        %p342 = pneg %p194
        %p343 = pneg %p218
        %p344 = pneg %p215
        %p345 = pneg %p244
        %p346 = pneg %p241
        %s347 = sand.u32 %s231, 1
        %s348 = scalar_lea.sflag [#allocation4], %s347
        %s349 = sand.u32 %s231, 1
        %s350 = smul.addr %s349, 8
        %s351 = scalar_lea.vmem [#allocation5], %s350
        %p352 = scmp.lt.s32.totalorder %s24, 1
        %s353 = scalar_select %p352, %s24, 1
        %s354 = smul.addr %s353, 8
        %s355 = scalar_lea.vmem %s0, %s354
        %p356 = scmp.lt.s32.totalorder %s24, 1
        %s357 = scalar_select %p356, %s24, 1
        %s358 = smul.addr %s357, 8
        %s359 = scalar_lea.vmem %s1, %s358
        %v361 = vld [vmem:[%s355] sm:$0xff]
        %v362 = vld [vmem:[%s359] sm:$0xff]
        %v363 = vld [vmem:[%s3] sm:$0x1]
        %365 = vset.pattern.permute.xlu0 0
        %366 = vperm.xlu0 %365, %v362
        %v367 = vpop.permute.xlu0 %366
        %v369 = vlaneseq
        %v370 = vshrl.u32 %v369, 7
        %v371 = vsub.s32 0, %v370
        %v372 = vrot.slane %v363, %v371
        %v373 = vmul.f32 %v367, %v372
        %v374 = vld [vmem:[%s4] sm:$0x1]
        %v376 = vlaneseq
        %v377 = vshrl.u32 %v376, 7
        %v378 = vsub.s32 0, %v377
        %v379 = vrot.slane %v374, %v378
        %v381 = vadd.f32 %v373, %v379
        %v382 = vld [vmem:[%s3 + $0x1] sm:$0x1]
        %383 = vset.pattern.permute.xlu0 1
        %384 = vperm.xlu0 %383, %v362
        %v385 = vpop.permute.xlu0 %384
        %v387 = vlaneseq
        %v388 = vshrl.u32 %v387, 7
        %v389 = vsub.s32 0, %v388
        %v390 = vrot.slane %v382, %v389
        %v391 = vmul.f32 %v385, %v390
        %v392 = vadd.f32 %v381, %v391
        %v393 = vlaneseq
        %v394 = vand.u32 %v393, 127
        %395 = vset.pattern.permute.xlu0 0
        %396 = vperm.xlu0 %395, %v361
        %v397 = vpop.permute.xlu0 %396
        %vm398 = vcmp.eq.s32.totalorder %v397, %v394
        %v399 = vsel %vm398, 1, 0
        %v400 = vcvt.s32.f32 %v399
        %401 = vset.pattern.permute.xlu0 1
        %402 = vperm.xlu0 %401, %v361
        %v403 = vpop.permute.xlu0 %402
        %vm404 = vcmp.eq.s32.totalorder %v403, %v394
        %v405 = vsel %vm404, 1, 0
        %v406 = vcvt.s32.f32 %v405
        %v407 = vadd.f32 %v400, %v406
        %408 = vset.pattern.permute.xlu0 2
        %409 = vperm.xlu0 %408, %v361
        %v410 = vpop.permute.xlu0 %409
        %vm411 = vcmp.eq.s32.totalorder %v410, %v394
        %v412 = vsel %vm411, 1, 0
        %v413 = vcvt.s32.f32 %v412
        %v414 = vadd.f32 %v407, %v413
        %415 = vset.pattern.permute.xlu0 3
        %416 = vperm.xlu0 %415, %v361
        %v417 = vpop.permute.xlu0 %416
        %vm418 = vcmp.eq.s32.totalorder %v417, %v394
        %v419 = vsel %vm418, 1, 0
        %v420 = vcvt.s32.f32 %v419
        %v421 = vadd.f32 %v414, %v420
        %422 = vset.pattern.permute.xlu0 4
        %423 = vperm.xlu0 %422, %v361
        %v424 = vpop.permute.xlu0 %423
        %vm425 = vcmp.eq.s32.totalorder %v424, %v394
        %v426 = vsel %vm425, 1, 0
        %v427 = vcvt.s32.f32 %v426
        %v428 = vadd.f32 %v421, %v427
        %429 = vset.pattern.permute.xlu0 5
        %430 = vperm.xlu0 %429, %v361
        %v431 = vpop.permute.xlu0 %430
        %vm432 = vcmp.eq.s32.totalorder %v431, %v394
        %v433 = vsel %vm432, 1, 0
        %v434 = vcvt.s32.f32 %v433
        %v435 = vadd.f32 %v428, %v434
        %436 = vset.pattern.permute.xlu0 6
        %437 = vperm.xlu0 %436, %v361
        %v438 = vpop.permute.xlu0 %437
        %vm439 = vcmp.eq.s32.totalorder %v438, %v394
        %v440 = vsel %vm439, 1, 0
        %v441 = vcvt.s32.f32 %v440
        %v442 = vadd.f32 %v435, %v441
        %443 = vset.pattern.permute.xlu0 7
        %444 = vperm.xlu0 %443, %v361
        %v445 = vpop.permute.xlu0 %444
        %vm446 = vcmp.eq.s32.totalorder %v445, %v394
        %v447 = vsel %vm446, 1, 0
        %v448 = vcvt.s32.f32 %v447
        %v449 = vadd.f32 %v442, %v448
        %v450 = vpack.c.bf16 %v449, %v449
        %v451 = vld [vmem:[#allocation2] sm:$0xf]
        %v452 = vld [vmem:[#allocation2 + $0x4] sm:$0xf]
        %v453 = vld [vmem:[#allocation2 + $0x8] sm:$0xf]
        %v454 = vld [vmem:[#allocation2 + $0xc] sm:$0xf]
        %v455 = vld [vmem:[#allocation2 + $0x10] sm:$0xf]
        %v456 = vld [vmem:[#allocation2 + $0x14] sm:$0xf]
        %v457 = vld [vmem:[#allocation2 + $0x18] sm:$0xf]
        %v458 = vld [vmem:[#allocation2 + $0x1c] sm:$0xf]
        %v459 = vld [vmem:[#allocation2 + $0x20] sm:$0xf]
        %v460 = vld [vmem:[#allocation2 + $0x24] sm:$0xf]
        %v461 = vld [vmem:[#allocation2 + $0x28] sm:$0xf]
        %v462 = vld [vmem:[#allocation2 + $0x2c] sm:$0xf]
        %v463 = vld [vmem:[#allocation2 + $0x30] sm:$0xf]
        %v464 = vld [vmem:[#allocation2 + $0x34] sm:$0xf]
        %v465 = vld [vmem:[#allocation2 + $0x38] sm:$0xf]
        %v466 = vld [vmem:[#allocation2 + $0x3c] sm:$0xf]
        %v483 = vunpack.c.l.b16 %v451
        %v484 = vunpack.c.l.b16 %v452
        %v485 = vunpack.c.l.b16 %v453
        %v486 = vunpack.c.l.b16 %v454
        %v487 = vunpack.c.l.b16 %v455
        %v488 = vunpack.c.l.b16 %v456
        %v489 = vunpack.c.l.b16 %v457
        %v490 = vunpack.c.l.b16 %v458
        %v491 = vunpack.c.l.b16 %v459
        %v492 = vunpack.c.l.b16 %v460
        %v493 = vunpack.c.l.b16 %v461
        %v494 = vunpack.c.l.b16 %v462
        %v495 = vunpack.c.l.b16 %v463
        %v496 = vunpack.c.l.b16 %v464
        %v497 = vunpack.c.l.b16 %v465
        %v498 = vunpack.c.l.b16 %v466
        %v499 = vpack.c.b16 %v484, %v483
        %v500 = vpack.c.b16 %v486, %v485
        %v501 = vpack.c.b16 %v488, %v487
        %v502 = vpack.c.b16 %v490, %v489
        %v503 = vpack.c.b16 %v492, %v491
        %v504 = vpack.c.b16 %v494, %v493
        %v505 = vpack.c.b16 %v496, %v495
        %v506 = vpack.c.b16 %v498, %v497
        %515 = vmatprep.subr.bf16.mxu0 0
        %516 = vmatpush1.bf16.msra.mxu0 %v499
        %517 = vmatprep.subr.bf16.mxu0 0
        %518 = vmatpush1.bf16.msra.mxu0 %v500
        %519 = vmatprep.subr.bf16.mxu0 0
        %520 = vmatpush1.bf16.msra.mxu0 %v501
        %521 = vmatprep.subr.bf16.mxu0 0
        %522 = vmatpush1.bf16.msra.mxu0 %v502
        %523 = vmatprep.subr.bf16.mxu0 0
        %524 = vmatpush1.bf16.msra.mxu0 %v503
        %525 = vmatprep.subr.bf16.mxu0 0
        %526 = vmatpush1.bf16.msra.mxu0 %v504
        %527 = vmatprep.subr.bf16.mxu0 0
        %528 = vmatpush1.bf16.msra.mxu0 %v505
        %529 = vmatprep.subr.bf16.mxu0 0
        %530 = vmatpush1.bf16.msra.mxu0 %v506
        %531 = vmatprep.subr.bf16.mxu0 0
        %532 = vmatpush1.bf16.msra.mxu0 0
        %533 = vmatprep.subr.bf16.mxu0 0
        %534 = vmatpush1.bf16.msra.mxu0 0
        %535 = vmatprep.subr.bf16.mxu0 0
        %536 = vmatpush1.bf16.msra.mxu0 0
        %537 = vmatprep.subr.bf16.mxu0 0
        %538 = vmatpush1.bf16.msra.mxu0 0
        %539 = vmatprep.subr.bf16.mxu0 0
        %540 = vmatpush1.bf16.msra.mxu0 0
        %541 = vmatprep.subr.bf16.mxu0 0
        %542 = vmatpush1.bf16.msra.mxu0 0
        %543 = vmatprep.subr.bf16.mxu0 0
        %544 = vmatpush1.bf16.msra.mxu0 0
        %545 = vmatprep.subr.bf16.mxu0 0
        %546 = vmatpush1.bf16.msra.mxu0 0
        %547 = vmatprep.mubr.bf16.mxu0 0
        %548 = vmatmul.mubr.bf16.gmra.mrb[0].mxu0 %v450
        %v549 = vpop.f32.mrb[0].mxu0
        %v550 = vadd.f32 0.0, %v549
        %v551 = vpop.f32.mrb[0].mxu0
        %v552 = vpop.f32.mrb[0].mxu0
        %v553 = vpop.f32.mrb[0].mxu0
        %554 = vdwg.mxu0
        %v555 = vadd.f32 %v392, %v550
        %v556 = vsub.s32 %v361, 128
        %557 = vset.pattern.permute.xlu0 0
        %558 = vperm.xlu0 %557, %v556
        %v559 = vpop.permute.xlu0 %558
        %vm560 = vcmp.eq.s32.totalorder %v559, %v394
        %v561 = vsel %vm560, 1, 0
        %v562 = vcvt.s32.f32 %v561
        %563 = vset.pattern.permute.xlu0 1
        %564 = vperm.xlu0 %563, %v556
        %v565 = vpop.permute.xlu0 %564
        %vm566 = vcmp.eq.s32.totalorder %v565, %v394
        %v567 = vsel %vm566, 1, 0
        %v568 = vcvt.s32.f32 %v567
        %v569 = vadd.f32 %v562, %v568
        %570 = vset.pattern.permute.xlu0 2
        %571 = vperm.xlu0 %570, %v556
        %v572 = vpop.permute.xlu0 %571
        %vm573 = vcmp.eq.s32.totalorder %v572, %v394
        %v574 = vsel %vm573, 1, 0
        %v575 = vcvt.s32.f32 %v574
        %v576 = vadd.f32 %v569, %v575
        %577 = vset.pattern.permute.xlu0 3
        %578 = vperm.xlu0 %577, %v556
        %v579 = vpop.permute.xlu0 %578
        %vm580 = vcmp.eq.s32.totalorder %v579, %v394
        %v581 = vsel %vm580, 1, 0
        %v582 = vcvt.s32.f32 %v581
        %v583 = vadd.f32 %v576, %v582
        %584 = vset.pattern.permute.xlu0 4
        %585 = vperm.xlu0 %584, %v556
        %v586 = vpop.permute.xlu0 %585
        %vm587 = vcmp.eq.s32.totalorder %v586, %v394
        %v588 = vsel %vm587, 1, 0
        %v589 = vcvt.s32.f32 %v588
        %v590 = vadd.f32 %v583, %v589
        %591 = vset.pattern.permute.xlu0 5
        %592 = vperm.xlu0 %591, %v556
        %v593 = vpop.permute.xlu0 %592
        %vm594 = vcmp.eq.s32.totalorder %v593, %v394
        %v595 = vsel %vm594, 1, 0
        %v596 = vcvt.s32.f32 %v595
        %v597 = vadd.f32 %v590, %v596
        %598 = vset.pattern.permute.xlu0 6
        %599 = vperm.xlu0 %598, %v556
        %v600 = vpop.permute.xlu0 %599
        %vm601 = vcmp.eq.s32.totalorder %v600, %v394
        %v602 = vsel %vm601, 1, 0
        %v603 = vcvt.s32.f32 %v602
        %v604 = vadd.f32 %v597, %v603
        %605 = vset.pattern.permute.xlu0 7
        %606 = vperm.xlu0 %605, %v556
        %v607 = vpop.permute.xlu0 %606
        %vm608 = vcmp.eq.s32.totalorder %v607, %v394
        %v609 = vsel %vm608, 1, 0
        %v610 = vcvt.s32.f32 %v609
        %v611 = vadd.f32 %v604, %v610
        %v612 = vpack.c.bf16 %v611, %v611
        %v613 = vld [vmem:[#allocation2 + $0x40] sm:$0xf]
        %v614 = vld [vmem:[#allocation2 + $0x44] sm:$0xf]
        %v615 = vld [vmem:[#allocation2 + $0x48] sm:$0xf]
        %v616 = vld [vmem:[#allocation2 + $0x4c] sm:$0xf]
        %v617 = vld [vmem:[#allocation2 + $0x50] sm:$0xf]
        %v618 = vld [vmem:[#allocation2 + $0x54] sm:$0xf]
        %v619 = vld [vmem:[#allocation2 + $0x58] sm:$0xf]
        %v620 = vld [vmem:[#allocation2 + $0x5c] sm:$0xf]
        %v621 = vld [vmem:[#allocation2 + $0x60] sm:$0xf]
        %v622 = vld [vmem:[#allocation2 + $0x64] sm:$0xf]
        %v623 = vld [vmem:[#allocation2 + $0x68] sm:$0xf]
        %v624 = vld [vmem:[#allocation2 + $0x6c] sm:$0xf]
        %v625 = vld [vmem:[#allocation2 + $0x70] sm:$0xf]
        %v626 = vld [vmem:[#allocation2 + $0x74] sm:$0xf]
        %v627 = vld [vmem:[#allocation2 + $0x78] sm:$0xf]
        %v628 = vld [vmem:[#allocation2 + $0x7c] sm:$0xf]
        %v645 = vunpack.c.l.b16 %v613
        %v646 = vunpack.c.l.b16 %v614
        %v647 = vunpack.c.l.b16 %v615
        %v648 = vunpack.c.l.b16 %v616
        %v649 = vunpack.c.l.b16 %v617
        %v650 = vunpack.c.l.b16 %v618
        %v651 = vunpack.c.l.b16 %v619
        %v652 = vunpack.c.l.b16 %v620
        %v653 = vunpack.c.l.b16 %v621
        %v654 = vunpack.c.l.b16 %v622
        %v655 = vunpack.c.l.b16 %v623
        %v656 = vunpack.c.l.b16 %v624
        %v657 = vunpack.c.l.b16 %v625
        %v658 = vunpack.c.l.b16 %v626
        %v659 = vunpack.c.l.b16 %v627
        %v660 = vunpack.c.l.b16 %v628
        %v661 = vpack.c.b16 %v646, %v645
        %v662 = vpack.c.b16 %v648, %v647
        %v663 = vpack.c.b16 %v650, %v649
        %v664 = vpack.c.b16 %v652, %v651
        %v665 = vpack.c.b16 %v654, %v653
        %v666 = vpack.c.b16 %v656, %v655
        %v667 = vpack.c.b16 %v658, %v657
        %v668 = vpack.c.b16 %v660, %v659
        %677 = vmatprep.subr.bf16.mxu0 0
        %678 = vmatpush1.bf16.msra.mxu0 %v661
        %679 = vmatprep.subr.bf16.mxu0 0
        %680 = vmatpush1.bf16.msra.mxu0 %v662
        %681 = vmatprep.subr.bf16.mxu0 0
        %682 = vmatpush1.bf16.msra.mxu0 %v663
        %683 = vmatprep.subr.bf16.mxu0 0
        %684 = vmatpush1.bf16.msra.mxu0 %v664
        %685 = vmatprep.subr.bf16.mxu0 0
        %686 = vmatpush1.bf16.msra.mxu0 %v665
        %687 = vmatprep.subr.bf16.mxu0 0
        %688 = vmatpush1.bf16.msra.mxu0 %v666
        %689 = vmatprep.subr.bf16.mxu0 0
        %690 = vmatpush1.bf16.msra.mxu0 %v667
        %691 = vmatprep.subr.bf16.mxu0 0
        %692 = vmatpush1.bf16.msra.mxu0 %v668
        %693 = vmatprep.subr.bf16.mxu0 0
        %694 = vmatpush1.bf16.msra.mxu0 0
        %695 = vmatprep.subr.bf16.mxu0 0
        %696 = vmatpush1.bf16.msra.mxu0 0
        %697 = vmatprep.subr.bf16.mxu0 0
        %698 = vmatpush1.bf16.msra.mxu0 0
        %699 = vmatprep.subr.bf16.mxu0 0
        %700 = vmatpush1.bf16.msra.mxu0 0
        %701 = vmatprep.subr.bf16.mxu0 0
        %702 = vmatpush1.bf16.msra.mxu0 0
        %703 = vmatprep.subr.bf16.mxu0 0
        %704 = vmatpush1.bf16.msra.mxu0 0
        %705 = vmatprep.subr.bf16.mxu0 0
        %706 = vmatpush1.bf16.msra.mxu0 0
        %707 = vmatprep.subr.bf16.mxu0 0
        %708 = vmatpush1.bf16.msra.mxu0 0
        %709 = vmatprep.mubr.bf16.mxu0 0
        %710 = vmatmul.mubr.bf16.gmra.mrb[0].mxu0 %v612
        %v711 = vpop.f32.mrb[0].mxu0
        %v712 = vadd.f32 0.0, %v711
        %v713 = vpop.f32.mrb[0].mxu0
        %v714 = vpop.f32.mrb[0].mxu0
        %v715 = vpop.f32.mrb[0].mxu0
        %716 = vdwg.mxu0
        %v717 = vadd.f32 %v555, %v712
        %v718 = vsub.s32 %v361, 256
        %719 = vset.pattern.permute.xlu0 0
        %720 = vperm.xlu0 %719, %v718
        %v721 = vpop.permute.xlu0 %720
        %vm722 = vcmp.eq.s32.totalorder %v721, %v394
        %v723 = vsel %vm722, 1, 0
        %v724 = vcvt.s32.f32 %v723
        %725 = vset.pattern.permute.xlu0 1
        %726 = vperm.xlu0 %725, %v718
        %v727 = vpop.permute.xlu0 %726
        %vm728 = vcmp.eq.s32.totalorder %v727, %v394
        %v729 = vsel %vm728, 1, 0
        %v730 = vcvt.s32.f32 %v729
        %v731 = vadd.f32 %v724, %v730
        %732 = vset.pattern.permute.xlu0 2
        %733 = vperm.xlu0 %732, %v718
        %v734 = vpop.permute.xlu0 %733
        %vm735 = vcmp.eq.s32.totalorder %v734, %v394
        %v736 = vsel %vm735, 1, 0
        %v737 = vcvt.s32.f32 %v736
        %v738 = vadd.f32 %v731, %v737
        %739 = vset.pattern.permute.xlu0 3
        %740 = vperm.xlu0 %739, %v718
        %v741 = vpop.permute.xlu0 %740
        %vm742 = vcmp.eq.s32.totalorder %v741, %v394
        %v743 = vsel %vm742, 1, 0
        %v744 = vcvt.s32.f32 %v743
        %v745 = vadd.f32 %v738, %v744
        %746 = vset.pattern.permute.xlu0 4
        %747 = vperm.xlu0 %746, %v718
        %v748 = vpop.permute.xlu0 %747
        %vm749 = vcmp.eq.s32.totalorder %v748, %v394
        %v750 = vsel %vm749, 1, 0
        %v751 = vcvt.s32.f32 %v750
        %v752 = vadd.f32 %v745, %v751
        %753 = vset.pattern.permute.xlu0 5
        %754 = vperm.xlu0 %753, %v718
        %v755 = vpop.permute.xlu0 %754
        %vm756 = vcmp.eq.s32.totalorder %v755, %v394
        %v757 = vsel %vm756, 1, 0
        %v758 = vcvt.s32.f32 %v757
        %v759 = vadd.f32 %v752, %v758
        %760 = vset.pattern.permute.xlu0 6
        %761 = vperm.xlu0 %760, %v718
        %v762 = vpop.permute.xlu0 %761
        %vm763 = vcmp.eq.s32.totalorder %v762, %v394
        %v764 = vsel %vm763, 1, 0
        %v765 = vcvt.s32.f32 %v764
        %v766 = vadd.f32 %v759, %v765
        %767 = vset.pattern.permute.xlu0 7
        %768 = vperm.xlu0 %767, %v718
        %v769 = vpop.permute.xlu0 %768
        %vm770 = vcmp.eq.s32.totalorder %v769, %v394
        %v771 = vsel %vm770, 1, 0
        %v772 = vcvt.s32.f32 %v771
        %v773 = vadd.f32 %v766, %v772
        %v774 = vpack.c.bf16 %v773, %v773
        %v775 = vld [vmem:[#allocation2 + $0x80] sm:$0xf]
        %v776 = vld [vmem:[#allocation2 + $0x84] sm:$0xf]
        %v777 = vld [vmem:[#allocation2 + $0x88] sm:$0xf]
        %v778 = vld [vmem:[#allocation2 + $0x8c] sm:$0xf]
        %v779 = vld [vmem:[#allocation2 + $0x90] sm:$0xf]
        %v780 = vld [vmem:[#allocation2 + $0x94] sm:$0xf]
        %v781 = vld [vmem:[#allocation2 + $0x98] sm:$0xf]
        %v782 = vld [vmem:[#allocation2 + $0x9c] sm:$0xf]
        %v783 = vld [vmem:[#allocation2 + $0xa0] sm:$0xf]
        %v784 = vld [vmem:[#allocation2 + $0xa4] sm:$0xf]
        %v785 = vld [vmem:[#allocation2 + $0xa8] sm:$0xf]
        %v786 = vld [vmem:[#allocation2 + $0xac] sm:$0xf]
        %v787 = vld [vmem:[#allocation2 + $0xb0] sm:$0xf]
        %v788 = vld [vmem:[#allocation2 + $0xb4] sm:$0xf]
        %v789 = vld [vmem:[#allocation2 + $0xb8] sm:$0xf]
        %v790 = vld [vmem:[#allocation2 + $0xbc] sm:$0xf]
        %v807 = vunpack.c.l.b16 %v775
        %v808 = vunpack.c.l.b16 %v776
        %v809 = vunpack.c.l.b16 %v777
        %v810 = vunpack.c.l.b16 %v778
        %v811 = vunpack.c.l.b16 %v779
        %v812 = vunpack.c.l.b16 %v780
        %v813 = vunpack.c.l.b16 %v781
        %v814 = vunpack.c.l.b16 %v782
        %v815 = vunpack.c.l.b16 %v783
        %v816 = vunpack.c.l.b16 %v784
        %v817 = vunpack.c.l.b16 %v785
        %v818 = vunpack.c.l.b16 %v786
        %v819 = vunpack.c.l.b16 %v787
        %v820 = vunpack.c.l.b16 %v788
        %v821 = vunpack.c.l.b16 %v789
        %v822 = vunpack.c.l.b16 %v790
        %v823 = vpack.c.b16 %v808, %v807
        %v824 = vpack.c.b16 %v810, %v809
        %v825 = vpack.c.b16 %v812, %v811
        %v826 = vpack.c.b16 %v814, %v813
        %v827 = vpack.c.b16 %v816, %v815
        %v828 = vpack.c.b16 %v818, %v817
        %v829 = vpack.c.b16 %v820, %v819
        %v830 = vpack.c.b16 %v822, %v821
        %839 = vmatprep.subr.bf16.mxu0 0
        %840 = vmatpush1.bf16.msra.mxu0 %v823
        %841 = vmatprep.subr.bf16.mxu0 0
        %842 = vmatpush1.bf16.msra.mxu0 %v824
        %843 = vmatprep.subr.bf16.mxu0 0
        %844 = vmatpush1.bf16.msra.mxu0 %v825
        %845 = vmatprep.subr.bf16.mxu0 0
        %846 = vmatpush1.bf16.msra.mxu0 %v826
        %847 = vmatprep.subr.bf16.mxu0 0
        %848 = vmatpush1.bf16.msra.mxu0 %v827
        %849 = vmatprep.subr.bf16.mxu0 0
        %850 = vmatpush1.bf16.msra.mxu0 %v828
        %851 = vmatprep.subr.bf16.mxu0 0
        %852 = vmatpush1.bf16.msra.mxu0 %v829
        %853 = vmatprep.subr.bf16.mxu0 0
        %854 = vmatpush1.bf16.msra.mxu0 %v830
        %855 = vmatprep.subr.bf16.mxu0 0
        %856 = vmatpush1.bf16.msra.mxu0 0
        %857 = vmatprep.subr.bf16.mxu0 0
        %858 = vmatpush1.bf16.msra.mxu0 0
        %859 = vmatprep.subr.bf16.mxu0 0
        %860 = vmatpush1.bf16.msra.mxu0 0
        %861 = vmatprep.subr.bf16.mxu0 0
        %862 = vmatpush1.bf16.msra.mxu0 0
        %863 = vmatprep.subr.bf16.mxu0 0
        %864 = vmatpush1.bf16.msra.mxu0 0
        %865 = vmatprep.subr.bf16.mxu0 0
        %866 = vmatpush1.bf16.msra.mxu0 0
        %867 = vmatprep.subr.bf16.mxu0 0
        %868 = vmatpush1.bf16.msra.mxu0 0
        %869 = vmatprep.subr.bf16.mxu0 0
        %870 = vmatpush1.bf16.msra.mxu0 0
        %871 = vmatprep.mubr.bf16.mxu0 0
        %872 = vmatmul.mubr.bf16.gmra.mrb[0].mxu0 %v774
        %v873 = vpop.f32.mrb[0].mxu0
        %v874 = vadd.f32 0.0, %v873
        %v875 = vpop.f32.mrb[0].mxu0
        %v876 = vpop.f32.mrb[0].mxu0
        %v877 = vpop.f32.mrb[0].mxu0
        %878 = vdwg.mxu0
        %v879 = vadd.f32 %v717, %v874
        %v880 = vsub.s32 %v361, 384
        %881 = vset.pattern.permute.xlu0 0
        %882 = vperm.xlu0 %881, %v880
        %v883 = vpop.permute.xlu0 %882
        %vm884 = vcmp.eq.s32.totalorder %v883, %v394
        %v885 = vsel %vm884, 1, 0
        %v886 = vcvt.s32.f32 %v885
        %887 = vset.pattern.permute.xlu0 1
        %888 = vperm.xlu0 %887, %v880
        %v889 = vpop.permute.xlu0 %888
        %vm890 = vcmp.eq.s32.totalorder %v889, %v394
        %v891 = vsel %vm890, 1, 0
        %v892 = vcvt.s32.f32 %v891
        %v893 = vadd.f32 %v886, %v892
        %894 = vset.pattern.permute.xlu0 2
        %895 = vperm.xlu0 %894, %v880
        %v896 = vpop.permute.xlu0 %895
        %vm897 = vcmp.eq.s32.totalorder %v896, %v394
        %v898 = vsel %vm897, 1, 0
        %v899 = vcvt.s32.f32 %v898
        %v900 = vadd.f32 %v893, %v899
        %901 = vset.pattern.permute.xlu0 3
        %902 = vperm.xlu0 %901, %v880
        %v903 = vpop.permute.xlu0 %902
        %vm904 = vcmp.eq.s32.totalorder %v903, %v394
        %v905 = vsel %vm904, 1, 0
        %v906 = vcvt.s32.f32 %v905
        %v907 = vadd.f32 %v900, %v906
        %908 = vset.pattern.permute.xlu0 4
        %909 = vperm.xlu0 %908, %v880
        %v910 = vpop.permute.xlu0 %909
        %vm911 = vcmp.eq.s32.totalorder %v910, %v394
        %v912 = vsel %vm911, 1, 0
        %v913 = vcvt.s32.f32 %v912
        %v914 = vadd.f32 %v907, %v913
        %915 = vset.pattern.permute.xlu0 5
        %916 = vperm.xlu0 %915, %v880
        %v917 = vpop.permute.xlu0 %916
        %vm918 = vcmp.eq.s32.totalorder %v917, %v394
        %v919 = vsel %vm918, 1, 0
        %v920 = vcvt.s32.f32 %v919
        %v921 = vadd.f32 %v914, %v920
        %922 = vset.pattern.permute.xlu0 6
        %923 = vperm.xlu0 %922, %v880
        %v924 = vpop.permute.xlu0 %923
        %vm925 = vcmp.eq.s32.totalorder %v924, %v394
        %v926 = vsel %vm925, 1, 0
        %v927 = vcvt.s32.f32 %v926
        %v928 = vadd.f32 %v921, %v927
        %929 = vset.pattern.permute.xlu0 7
        %930 = vperm.xlu0 %929, %v880
        %v931 = vpop.permute.xlu0 %930
        %vm932 = vcmp.eq.s32.totalorder %v931, %v394
        %v933 = vsel %vm932, 1, 0
        %v934 = vcvt.s32.f32 %v933
        %v935 = vadd.f32 %v928, %v934
        %v936 = vpack.c.bf16 %v935, %v935
        %v937 = vld [vmem:[#allocation2 + $0xc0] sm:$0xf]
        %v938 = vld [vmem:[#allocation2 + $0xc4] sm:$0xf]
        %v939 = vld [vmem:[#allocation2 + $0xc8] sm:$0xf]
        %v940 = vld [vmem:[#allocation2 + $0xcc] sm:$0xf]
        %v941 = vld [vmem:[#allocation2 + $0xd0] sm:$0xf]
        %v942 = vld [vmem:[#allocation2 + $0xd4] sm:$0xf]
        %v943 = vld [vmem:[#allocation2 + $0xd8] sm:$0xf]
        %v944 = vld [vmem:[#allocation2 + $0xdc] sm:$0xf]
        %v945 = vld [vmem:[#allocation2 + $0xe0] sm:$0xf]
        %v946 = vld [vmem:[#allocation2 + $0xe4] sm:$0xf]
        %v947 = vld [vmem:[#allocation2 + $0xe8] sm:$0xf]
        %v948 = vld [vmem:[#allocation2 + $0xec] sm:$0xf]
        %v949 = vld [vmem:[#allocation2 + $0xf0] sm:$0xf]
        %v950 = vld [vmem:[#allocation2 + $0xf4] sm:$0xf]
        %v951 = vld [vmem:[#allocation2 + $0xf8] sm:$0xf]
        %v952 = vld [vmem:[#allocation2 + $0xfc] sm:$0xf]
        %v969 = vunpack.c.l.b16 %v937
        %v970 = vunpack.c.l.b16 %v938
        %v971 = vunpack.c.l.b16 %v939
        %v972 = vunpack.c.l.b16 %v940
        %v973 = vunpack.c.l.b16 %v941
        %v974 = vunpack.c.l.b16 %v942
        %v975 = vunpack.c.l.b16 %v943
        %v976 = vunpack.c.l.b16 %v944
        %v977 = vunpack.c.l.b16 %v945
        %v978 = vunpack.c.l.b16 %v946
        %v979 = vunpack.c.l.b16 %v947
        %v980 = vunpack.c.l.b16 %v948
        %v981 = vunpack.c.l.b16 %v949
        %v982 = vunpack.c.l.b16 %v950
        %v983 = vunpack.c.l.b16 %v951
        %v984 = vunpack.c.l.b16 %v952
        %v985 = vpack.c.b16 %v970, %v969
        %v986 = vpack.c.b16 %v972, %v971
        %v987 = vpack.c.b16 %v974, %v973
        %v988 = vpack.c.b16 %v976, %v975
        %v989 = vpack.c.b16 %v978, %v977
        %v990 = vpack.c.b16 %v980, %v979
        %v991 = vpack.c.b16 %v982, %v981
        %v992 = vpack.c.b16 %v984, %v983
        %1001 = vmatprep.subr.bf16.mxu0 0
        %1002 = vmatpush1.bf16.msra.mxu0 %v985
        %1003 = vmatprep.subr.bf16.mxu0 0
        %1004 = vmatpush1.bf16.msra.mxu0 %v986
        %1005 = vmatprep.subr.bf16.mxu0 0
        %1006 = vmatpush1.bf16.msra.mxu0 %v987
        %1007 = vmatprep.subr.bf16.mxu0 0
        %1008 = vmatpush1.bf16.msra.mxu0 %v988
        %1009 = vmatprep.subr.bf16.mxu0 0
        %1010 = vmatpush1.bf16.msra.mxu0 %v989
        %1011 = vmatprep.subr.bf16.mxu0 0
        %1012 = vmatpush1.bf16.msra.mxu0 %v990
        %1013 = vmatprep.subr.bf16.mxu0 0
        %1014 = vmatpush1.bf16.msra.mxu0 %v991
        %1015 = vmatprep.subr.bf16.mxu0 0
        %1016 = vmatpush1.bf16.msra.mxu0 %v992
        %1017 = vmatprep.subr.bf16.mxu0 0
        %1018 = vmatpush1.bf16.msra.mxu0 0
        %1019 = vmatprep.subr.bf16.mxu0 0
        %1020 = vmatpush1.bf16.msra.mxu0 0
        %1021 = vmatprep.subr.bf16.mxu0 0
        %1022 = vmatpush1.bf16.msra.mxu0 0
        %1023 = vmatprep.subr.bf16.mxu0 0
        %1024 = vmatpush1.bf16.msra.mxu0 0
        %1025 = vmatprep.subr.bf16.mxu0 0
        %1026 = vmatpush1.bf16.msra.mxu0 0
        %1027 = vmatprep.subr.bf16.mxu0 0
        %1028 = vmatpush1.bf16.msra.mxu0 0
        %1029 = vmatprep.subr.bf16.mxu0 0
        %1030 = vmatpush1.bf16.msra.mxu0 0
        %1031 = vmatprep.subr.bf16.mxu0 0
        %1032 = vmatpush1.bf16.msra.mxu0 0
        %1033 = vmatprep.mubr.bf16.mxu0 0
        %1034 = vmatmul.mubr.bf16.gmra.mrb[0].mxu0 %v936
        %v1035 = vpop.f32.mrb[0].mxu0
        %v1036 = vadd.f32 0.0, %v1035
        %v1037 = vpop.f32.mrb[0].mxu0
        %v1038 = vpop.f32.mrb[0].mxu0
        %v1039 = vpop.f32.mrb[0].mxu0
        %1040 = vdwg.mxu0
        %v1041 = vadd.f32 %v879, %v1036
        %v1042 = vsub.s32 %v361, 512
        %1043 = vset.pattern.permute.xlu0 0
        %1044 = vperm.xlu0 %1043, %v1042
        %v1045 = vpop.permute.xlu0 %1044
        %vm1046 = vcmp.eq.s32.totalorder %v1045, %v394
        %v1047 = vsel %vm1046, 1, 0
        %v1048 = vcvt.s32.f32 %v1047
        %1049 = vset.pattern.permute.xlu0 1
        %1050 = vperm.xlu0 %1049, %v1042
        %v1051 = vpop.permute.xlu0 %1050
        %vm1052 = vcmp.eq.s32.totalorder %v1051, %v394
        %v1053 = vsel %vm1052, 1, 0
        %v1054 = vcvt.s32.f32 %v1053
        %v1055 = vadd.f32 %v1048, %v1054
        %1056 = vset.pattern.permute.xlu0 2
        %1057 = vperm.xlu0 %1056, %v1042
        %v1058 = vpop.permute.xlu0 %1057
        %vm1059 = vcmp.eq.s32.totalorder %v1058, %v394
        %v1060 = vsel %vm1059, 1, 0
        %v1061 = vcvt.s32.f32 %v1060
        %v1062 = vadd.f32 %v1055, %v1061
        %1063 = vset.pattern.permute.xlu0 3
        %1064 = vperm.xlu0 %1063, %v1042
        %v1065 = vpop.permute.xlu0 %1064
        %vm1066 = vcmp.eq.s32.totalorder %v1065, %v394
        %v1067 = vsel %vm1066, 1, 0
        %v1068 = vcvt.s32.f32 %v1067
        %v1069 = vadd.f32 %v1062, %v1068
        %1070 = vset.pattern.permute.xlu0 4
        %1071 = vperm.xlu0 %1070, %v1042
        %v1072 = vpop.permute.xlu0 %1071
        %vm1073 = vcmp.eq.s32.totalorder %v1072, %v394
        %v1074 = vsel %vm1073, 1, 0
        %v1075 = vcvt.s32.f32 %v1074
        %v1076 = vadd.f32 %v1069, %v1075
        %1077 = vset.pattern.permute.xlu0 5
        %1078 = vperm.xlu0 %1077, %v1042
        %v1079 = vpop.permute.xlu0 %1078
        %vm1080 = vcmp.eq.s32.totalorder %v1079, %v394
        %v1081 = vsel %vm1080, 1, 0
        %v1082 = vcvt.s32.f32 %v1081
        %v1083 = vadd.f32 %v1076, %v1082
        %1084 = vset.pattern.permute.xlu0 6
        %1085 = vperm.xlu0 %1084, %v1042
        %v1086 = vpop.permute.xlu0 %1085
        %vm1087 = vcmp.eq.s32.totalorder %v1086, %v394
        %v1088 = vsel %vm1087, 1, 0
        %v1089 = vcvt.s32.f32 %v1088
        %v1090 = vadd.f32 %v1083, %v1089
        %1091 = vset.pattern.permute.xlu0 7
        %1092 = vperm.xlu0 %1091, %v1042
        %v1093 = vpop.permute.xlu0 %1092
        %vm1094 = vcmp.eq.s32.totalorder %v1093, %v394
        %v1095 = vsel %vm1094, 1, 0
        %v1096 = vcvt.s32.f32 %v1095
        %v1097 = vadd.f32 %v1090, %v1096
        %v1098 = vpack.c.bf16 %v1097, %v1097
        %v1099 = vld [vmem:[#allocation2 + $0x100] sm:$0xf]
        %v1100 = vld [vmem:[#allocation2 + $0x104] sm:$0xf]
        %v1101 = vld [vmem:[#allocation2 + $0x108] sm:$0xf]
        %v1102 = vld [vmem:[#allocation2 + $0x10c] sm:$0xf]
        %v1103 = vld [vmem:[#allocation2 + $0x110] sm:$0xf]
        %v1104 = vld [vmem:[#allocation2 + $0x114] sm:$0xf]
        %v1105 = vld [vmem:[#allocation2 + $0x118] sm:$0xf]
        %v1106 = vld [vmem:[#allocation2 + $0x11c] sm:$0xf]
        %v1107 = vld [vmem:[#allocation2 + $0x120] sm:$0xf]
        %v1108 = vld [vmem:[#allocation2 + $0x124] sm:$0xf]
        %v1109 = vld [vmem:[#allocation2 + $0x128] sm:$0xf]
        %v1110 = vld [vmem:[#allocation2 + $0x12c] sm:$0xf]
        %v1111 = vld [vmem:[#allocation2 + $0x130] sm:$0xf]
        %v1112 = vld [vmem:[#allocation2 + $0x134] sm:$0xf]
        %v1113 = vld [vmem:[#allocation2 + $0x138] sm:$0xf]
        %v1114 = vld [vmem:[#allocation2 + $0x13c] sm:$0xf]
        %v1131 = vunpack.c.l.b16 %v1099
        %v1132 = vunpack.c.l.b16 %v1100
        %v1133 = vunpack.c.l.b16 %v1101
        %v1134 = vunpack.c.l.b16 %v1102
        %v1135 = vunpack.c.l.b16 %v1103
        %v1136 = vunpack.c.l.b16 %v1104
        %v1137 = vunpack.c.l.b16 %v1105
        %v1138 = vunpack.c.l.b16 %v1106
        %v1139 = vunpack.c.l.b16 %v1107
        %v1140 = vunpack.c.l.b16 %v1108
        %v1141 = vunpack.c.l.b16 %v1109
        %v1142 = vunpack.c.l.b16 %v1110
        %v1143 = vunpack.c.l.b16 %v1111
        %v1144 = vunpack.c.l.b16 %v1112
        %v1145 = vunpack.c.l.b16 %v1113
        %v1146 = vunpack.c.l.b16 %v1114
        %v1147 = vpack.c.b16 %v1132, %v1131
        %v1148 = vpack.c.b16 %v1134, %v1133
        %v1149 = vpack.c.b16 %v1136, %v1135
        %v1150 = vpack.c.b16 %v1138, %v1137
        %v1151 = vpack.c.b16 %v1140, %v1139
        %v1152 = vpack.c.b16 %v1142, %v1141
        %v1153 = vpack.c.b16 %v1144, %v1143
        %v1154 = vpack.c.b16 %v1146, %v1145
        %1163 = vmatprep.subr.bf16.mxu0 0
        %1164 = vmatpush1.bf16.msra.mxu0 %v1147
        %1165 = vmatprep.subr.bf16.mxu0 0
        %1166 = vmatpush1.bf16.msra.mxu0 %v1148
        %1167 = vmatprep.subr.bf16.mxu0 0
        %1168 = vmatpush1.bf16.msra.mxu0 %v1149
        %1169 = vmatprep.subr.bf16.mxu0 0
        %1170 = vmatpush1.bf16.msra.mxu0 %v1150
        %1171 = vmatprep.subr.bf16.mxu0 0
        %1172 = vmatpush1.bf16.msra.mxu0 %v1151
        %1173 = vmatprep.subr.bf16.mxu0 0
        %1174 = vmatpush1.bf16.msra.mxu0 %v1152
        %1175 = vmatprep.subr.bf16.mxu0 0
        %1176 = vmatpush1.bf16.msra.mxu0 %v1153
        %1177 = vmatprep.subr.bf16.mxu0 0
        %1178 = vmatpush1.bf16.msra.mxu0 %v1154
        %1179 = vmatprep.subr.bf16.mxu0 0
        %1180 = vmatpush1.bf16.msra.mxu0 0
        %1181 = vmatprep.subr.bf16.mxu0 0
        %1182 = vmatpush1.bf16.msra.mxu0 0
        %1183 = vmatprep.subr.bf16.mxu0 0
        %1184 = vmatpush1.bf16.msra.mxu0 0
        %1185 = vmatprep.subr.bf16.mxu0 0
        %1186 = vmatpush1.bf16.msra.mxu0 0
        %1187 = vmatprep.subr.bf16.mxu0 0
        %1188 = vmatpush1.bf16.msra.mxu0 0
        %1189 = vmatprep.subr.bf16.mxu0 0
        %1190 = vmatpush1.bf16.msra.mxu0 0
        %1191 = vmatprep.subr.bf16.mxu0 0
        %1192 = vmatpush1.bf16.msra.mxu0 0
        %1193 = vmatprep.subr.bf16.mxu0 0
        %1194 = vmatpush1.bf16.msra.mxu0 0
        %1195 = vmatprep.mubr.bf16.mxu0 0
        %1196 = vmatmul.mubr.bf16.gmra.mrb[0].mxu0 %v1098
        %v1197 = vpop.f32.mrb[0].mxu0
        %v1198 = vadd.f32 0.0, %v1197
        %v1199 = vpop.f32.mrb[0].mxu0
        %v1200 = vpop.f32.mrb[0].mxu0
        %v1201 = vpop.f32.mrb[0].mxu0
        %1202 = vdwg.mxu0
        %v1203 = vadd.f32 %v1041, %v1198
        %v1204 = vsub.s32 %v361, 640
        %1205 = vset.pattern.permute.xlu0 0
        %1206 = vperm.xlu0 %1205, %v1204
        %v1207 = vpop.permute.xlu0 %1206
        %vm1208 = vcmp.eq.s32.totalorder %v1207, %v394
        %v1209 = vsel %vm1208, 1, 0
        %v1210 = vcvt.s32.f32 %v1209
        %1211 = vset.pattern.permute.xlu0 1
        %1212 = vperm.xlu0 %1211, %v1204
        %v1213 = vpop.permute.xlu0 %1212
        %vm1214 = vcmp.eq.s32.totalorder %v1213, %v394
        %v1215 = vsel %vm1214, 1, 0
        %v1216 = vcvt.s32.f32 %v1215
        %v1217 = vadd.f32 %v1210, %v1216
        %1218 = vset.pattern.permute.xlu0 2
        %1219 = vperm.xlu0 %1218, %v1204
        %v1220 = vpop.permute.xlu0 %1219
        %vm1221 = vcmp.eq.s32.totalorder %v1220, %v394
        %v1222 = vsel %vm1221, 1, 0
        %v1223 = vcvt.s32.f32 %v1222
        %v1224 = vadd.f32 %v1217, %v1223
        %1225 = vset.pattern.permute.xlu0 3
        %1226 = vperm.xlu0 %1225, %v1204
        %v1227 = vpop.permute.xlu0 %1226
        %vm1228 = vcmp.eq.s32.totalorder %v1227, %v394
        %v1229 = vsel %vm1228, 1, 0
        %v1230 = vcvt.s32.f32 %v1229
        %v1231 = vadd.f32 %v1224, %v1230
        %1232 = vset.pattern.permute.xlu0 4
        %1233 = vperm.xlu0 %1232, %v1204
        %v1234 = vpop.permute.xlu0 %1233
        %vm1235 = vcmp.eq.s32.totalorder %v1234, %v394
        %v1236 = vsel %vm1235, 1, 0
        %v1237 = vcvt.s32.f32 %v1236
        %v1238 = vadd.f32 %v1231, %v1237
        %1239 = vset.pattern.permute.xlu0 5
        %1240 = vperm.xlu0 %1239, %v1204
        %v1241 = vpop.permute.xlu0 %1240
        %vm1242 = vcmp.eq.s32.totalorder %v1241, %v394
        %v1243 = vsel %vm1242, 1, 0
        %v1244 = vcvt.s32.f32 %v1243
        %v1245 = vadd.f32 %v1238, %v1244
        %1246 = vset.pattern.permute.xlu0 6
        %1247 = vperm.xlu0 %1246, %v1204
        %v1248 = vpop.permute.xlu0 %1247
        %vm1249 = vcmp.eq.s32.totalorder %v1248, %v394
        %v1250 = vsel %vm1249, 1, 0
        %v1251 = vcvt.s32.f32 %v1250
        %v1252 = vadd.f32 %v1245, %v1251
        %1253 = vset.pattern.permute.xlu0 7
        %1254 = vperm.xlu0 %1253, %v1204
        %v1255 = vpop.permute.xlu0 %1254
        %vm1256 = vcmp.eq.s32.totalorder %v1255, %v394
        %v1257 = vsel %vm1256, 1, 0
        %v1258 = vcvt.s32.f32 %v1257
        %v1259 = vadd.f32 %v1252, %v1258
        %v1260 = vpack.c.bf16 %v1259, %v1259
        %v1261 = vld [vmem:[#allocation2 + $0x140] sm:$0xf]
        %v1262 = vld [vmem:[#allocation2 + $0x144] sm:$0xf]
        %v1263 = vld [vmem:[#allocation2 + $0x148] sm:$0xf]
        %v1264 = vld [vmem:[#allocation2 + $0x14c] sm:$0xf]
        %v1265 = vld [vmem:[#allocation2 + $0x150] sm:$0xf]
        %v1266 = vld [vmem:[#allocation2 + $0x154] sm:$0xf]
        %v1267 = vld [vmem:[#allocation2 + $0x158] sm:$0xf]
        %v1268 = vld [vmem:[#allocation2 + $0x15c] sm:$0xf]
        %v1269 = vld [vmem:[#allocation2 + $0x160] sm:$0xf]
        %v1270 = vld [vmem:[#allocation2 + $0x164] sm:$0xf]
        %v1271 = vld [vmem:[#allocation2 + $0x168] sm:$0xf]
        %v1272 = vld [vmem:[#allocation2 + $0x16c] sm:$0xf]
        %v1273 = vld [vmem:[#allocation2 + $0x170] sm:$0xf]
        %v1274 = vld [vmem:[#allocation2 + $0x174] sm:$0xf]
        %v1275 = vld [vmem:[#allocation2 + $0x178] sm:$0xf]
        %v1276 = vld [vmem:[#allocation2 + $0x17c] sm:$0xf]
        %v1293 = vunpack.c.l.b16 %v1261
        %v1294 = vunpack.c.l.b16 %v1262
        %v1295 = vunpack.c.l.b16 %v1263
        %v1296 = vunpack.c.l.b16 %v1264
        %v1297 = vunpack.c.l.b16 %v1265
        %v1298 = vunpack.c.l.b16 %v1266
        %v1299 = vunpack.c.l.b16 %v1267
        %v1300 = vunpack.c.l.b16 %v1268
        %v1301 = vunpack.c.l.b16 %v1269
        %v1302 = vunpack.c.l.b16 %v1270
        %v1303 = vunpack.c.l.b16 %v1271
        %v1304 = vunpack.c.l.b16 %v1272
        %v1305 = vunpack.c.l.b16 %v1273
        %v1306 = vunpack.c.l.b16 %v1274
        %v1307 = vunpack.c.l.b16 %v1275
        %v1308 = vunpack.c.l.b16 %v1276
        %v1309 = vpack.c.b16 %v1294, %v1293
        %v1310 = vpack.c.b16 %v1296, %v1295
        %v1311 = vpack.c.b16 %v1298, %v1297
        %v1312 = vpack.c.b16 %v1300, %v1299
        %v1313 = vpack.c.b16 %v1302, %v1301
        %v1314 = vpack.c.b16 %v1304, %v1303
        %v1315 = vpack.c.b16 %v1306, %v1305
        %v1316 = vpack.c.b16 %v1308, %v1307
        %1325 = vmatprep.subr.bf16.mxu0 0
        %1326 = vmatpush1.bf16.msra.mxu0 %v1309
        %1327 = vmatprep.subr.bf16.mxu0 0
        %1328 = vmatpush1.bf16.msra.mxu0 %v1310
        %1329 = vmatprep.subr.bf16.mxu0 0
        %1330 = vmatpush1.bf16.msra.mxu0 %v1311
        %1331 = vmatprep.subr.bf16.mxu0 0
        %1332 = vmatpush1.bf16.msra.mxu0 %v1312
        %1333 = vmatprep.subr.bf16.mxu0 0
        %1334 = vmatpush1.bf16.msra.mxu0 %v1313
        %1335 = vmatprep.subr.bf16.mxu0 0
        %1336 = vmatpush1.bf16.msra.mxu0 %v1314
        %1337 = vmatprep.subr.bf16.mxu0 0
        %1338 = vmatpush1.bf16.msra.mxu0 %v1315
        %1339 = vmatprep.subr.bf16.mxu0 0
        %1340 = vmatpush1.bf16.msra.mxu0 %v1316
        %1341 = vmatprep.subr.bf16.mxu0 0
        %1342 = vmatpush1.bf16.msra.mxu0 0
        %1343 = vmatprep.subr.bf16.mxu0 0
        %1344 = vmatpush1.bf16.msra.mxu0 0
        %1345 = vmatprep.subr.bf16.mxu0 0
        %1346 = vmatpush1.bf16.msra.mxu0 0
        %1347 = vmatprep.subr.bf16.mxu0 0
        %1348 = vmatpush1.bf16.msra.mxu0 0
        %1349 = vmatprep.subr.bf16.mxu0 0
        %1350 = vmatpush1.bf16.msra.mxu0 0
        %1351 = vmatprep.subr.bf16.mxu0 0
        %1352 = vmatpush1.bf16.msra.mxu0 0
        %1353 = vmatprep.subr.bf16.mxu0 0
        %1354 = vmatpush1.bf16.msra.mxu0 0
        %1355 = vmatprep.subr.bf16.mxu0 0
        %1356 = vmatpush1.bf16.msra.mxu0 0
        %1357 = vmatprep.mubr.bf16.mxu0 0
        %1358 = vmatmul.mubr.bf16.gmra.mrb[0].mxu0 %v1260
        %v1359 = vpop.f32.mrb[0].mxu0
        %v1360 = vadd.f32 0.0, %v1359
        %v1361 = vpop.f32.mrb[0].mxu0
        %v1362 = vpop.f32.mrb[0].mxu0
        %v1363 = vpop.f32.mrb[0].mxu0
        %1364 = vdwg.mxu0
        %v1365 = vadd.f32 %v1203, %v1360
        %v1366 = vsub.s32 %v361, 768
        %1367 = vset.pattern.permute.xlu0 0
        %1368 = vperm.xlu0 %1367, %v1366
        %v1369 = vpop.permute.xlu0 %1368
        %vm1370 = vcmp.eq.s32.totalorder %v1369, %v394
        %v1371 = vsel %vm1370, 1, 0
        %v1372 = vcvt.s32.f32 %v1371
        %1373 = vset.pattern.permute.xlu0 1
        %1374 = vperm.xlu0 %1373, %v1366
        %v1375 = vpop.permute.xlu0 %1374
        %vm1376 = vcmp.eq.s32.totalorder %v1375, %v394
        %v1377 = vsel %vm1376, 1, 0
        %v1378 = vcvt.s32.f32 %v1377
        %v1379 = vadd.f32 %v1372, %v1378
        %1380 = vset.pattern.permute.xlu0 2
        %1381 = vperm.xlu0 %1380, %v1366
        %v1382 = vpop.permute.xlu0 %1381
        %vm1383 = vcmp.eq.s32.totalorder %v1382, %v394
        %v1384 = vsel %vm1383, 1, 0
        %v1385 = vcvt.s32.f32 %v1384
        %v1386 = vadd.f32 %v1379, %v1385
        %1387 = vset.pattern.permute.xlu0 3
        %1388 = vperm.xlu0 %1387, %v1366
        %v1389 = vpop.permute.xlu0 %1388
        %vm1390 = vcmp.eq.s32.totalorder %v1389, %v394
        %v1391 = vsel %vm1390, 1, 0
        %v1392 = vcvt.s32.f32 %v1391
        %v1393 = vadd.f32 %v1386, %v1392
        %1394 = vset.pattern.permute.xlu0 4
        %1395 = vperm.xlu0 %1394, %v1366
        %v1396 = vpop.permute.xlu0 %1395
        %vm1397 = vcmp.eq.s32.totalorder %v1396, %v394
        %v1398 = vsel %vm1397, 1, 0
        %v1399 = vcvt.s32.f32 %v1398
        %v1400 = vadd.f32 %v1393, %v1399
        %1401 = vset.pattern.permute.xlu0 5
        %1402 = vperm.xlu0 %1401, %v1366
        %v1403 = vpop.permute.xlu0 %1402
        %vm1404 = vcmp.eq.s32.totalorder %v1403, %v394
        %v1405 = vsel %vm1404, 1, 0
        %v1406 = vcvt.s32.f32 %v1405
        %v1407 = vadd.f32 %v1400, %v1406
        %1408 = vset.pattern.permute.xlu0 6
        %1409 = vperm.xlu0 %1408, %v1366
        %v1410 = vpop.permute.xlu0 %1409
        %vm1411 = vcmp.eq.s32.totalorder %v1410, %v394
        %v1412 = vsel %vm1411, 1, 0
        %v1413 = vcvt.s32.f32 %v1412
        %v1414 = vadd.f32 %v1407, %v1413
        %1415 = vset.pattern.permute.xlu0 7
        %1416 = vperm.xlu0 %1415, %v1366
        %v1417 = vpop.permute.xlu0 %1416
        %vm1418 = vcmp.eq.s32.totalorder %v1417, %v394
        %v1419 = vsel %vm1418, 1, 0
        %v1420 = vcvt.s32.f32 %v1419
        %v1421 = vadd.f32 %v1414, %v1420
        %v1422 = vpack.c.bf16 %v1421, %v1421
        %v1423 = vld [vmem:[#allocation2 + $0x180] sm:$0xf]
        %v1424 = vld [vmem:[#allocation2 + $0x184] sm:$0xf]
        %v1425 = vld [vmem:[#allocation2 + $0x188] sm:$0xf]
        %v1426 = vld [vmem:[#allocation2 + $0x18c] sm:$0xf]
        %v1427 = vld [vmem:[#allocation2 + $0x190] sm:$0xf]
        %v1428 = vld [vmem:[#allocation2 + $0x194] sm:$0xf]
        %v1429 = vld [vmem:[#allocation2 + $0x198] sm:$0xf]
        %v1430 = vld [vmem:[#allocation2 + $0x19c] sm:$0xf]
        %v1431 = vld [vmem:[#allocation2 + $0x1a0] sm:$0xf]
        %v1432 = vld [vmem:[#allocation2 + $0x1a4] sm:$0xf]
        %v1433 = vld [vmem:[#allocation2 + $0x1a8] sm:$0xf]
        %v1434 = vld [vmem:[#allocation2 + $0x1ac] sm:$0xf]
        %v1435 = vld [vmem:[#allocation2 + $0x1b0] sm:$0xf]
        %v1436 = vld [vmem:[#allocation2 + $0x1b4] sm:$0xf]
        %v1437 = vld [vmem:[#allocation2 + $0x1b8] sm:$0xf]
        %v1438 = vld [vmem:[#allocation2 + $0x1bc] sm:$0xf]
        %v1455 = vunpack.c.l.b16 %v1423
        %v1456 = vunpack.c.l.b16 %v1424
        %v1457 = vunpack.c.l.b16 %v1425
        %v1458 = vunpack.c.l.b16 %v1426
        %v1459 = vunpack.c.l.b16 %v1427
        %v1460 = vunpack.c.l.b16 %v1428
        %v1461 = vunpack.c.l.b16 %v1429
        %v1462 = vunpack.c.l.b16 %v1430
        %v1463 = vunpack.c.l.b16 %v1431
        %v1464 = vunpack.c.l.b16 %v1432
        %v1465 = vunpack.c.l.b16 %v1433
        %v1466 = vunpack.c.l.b16 %v1434
        %v1467 = vunpack.c.l.b16 %v1435
        %v1468 = vunpack.c.l.b16 %v1436
        %v1469 = vunpack.c.l.b16 %v1437
        %v1470 = vunpack.c.l.b16 %v1438
        %v1471 = vpack.c.b16 %v1456, %v1455
        %v1472 = vpack.c.b16 %v1458, %v1457
        %v1473 = vpack.c.b16 %v1460, %v1459
        %v1474 = vpack.c.b16 %v1462, %v1461
        %v1475 = vpack.c.b16 %v1464, %v1463
        %v1476 = vpack.c.b16 %v1466, %v1465
        %v1477 = vpack.c.b16 %v1468, %v1467
        %v1478 = vpack.c.b16 %v1470, %v1469
        %1487 = vmatprep.subr.bf16.mxu0 0
        %1488 = vmatpush1.bf16.msra.mxu0 %v1471
        %1489 = vmatprep.subr.bf16.mxu0 0
        %1490 = vmatpush1.bf16.msra.mxu0 %v1472
        %1491 = vmatprep.subr.bf16.mxu0 0
        %1492 = vmatpush1.bf16.msra.mxu0 %v1473
        %1493 = vmatprep.subr.bf16.mxu0 0
        %1494 = vmatpush1.bf16.msra.mxu0 %v1474
        %1495 = vmatprep.subr.bf16.mxu0 0
        %1496 = vmatpush1.bf16.msra.mxu0 %v1475
        %1497 = vmatprep.subr.bf16.mxu0 0
        %1498 = vmatpush1.bf16.msra.mxu0 %v1476
        %1499 = vmatprep.subr.bf16.mxu0 0
        %1500 = vmatpush1.bf16.msra.mxu0 %v1477
        %1501 = vmatprep.subr.bf16.mxu0 0
        %1502 = vmatpush1.bf16.msra.mxu0 %v1478
        %1503 = vmatprep.subr.bf16.mxu0 0
        %1504 = vmatpush1.bf16.msra.mxu0 0
        %1505 = vmatprep.subr.bf16.mxu0 0
        %1506 = vmatpush1.bf16.msra.mxu0 0
        %1507 = vmatprep.subr.bf16.mxu0 0
        %1508 = vmatpush1.bf16.msra.mxu0 0
        %1509 = vmatprep.subr.bf16.mxu0 0
        %1510 = vmatpush1.bf16.msra.mxu0 0
        %1511 = vmatprep.subr.bf16.mxu0 0
        %1512 = vmatpush1.bf16.msra.mxu0 0
        %1513 = vmatprep.subr.bf16.mxu0 0
        %1514 = vmatpush1.bf16.msra.mxu0 0
        %1515 = vmatprep.subr.bf16.mxu0 0
        %1516 = vmatpush1.bf16.msra.mxu0 0
        %1517 = vmatprep.subr.bf16.mxu0 0
        %1518 = vmatpush1.bf16.msra.mxu0 0
        %1519 = vmatprep.mubr.bf16.mxu0 0
        %1520 = vmatmul.mubr.bf16.gmra.mrb[0].mxu0 %v1422
        %v1521 = vpop.f32.mrb[0].mxu0
        %v1522 = vadd.f32 0.0, %v1521
        %v1523 = vpop.f32.mrb[0].mxu0
        %v1524 = vpop.f32.mrb[0].mxu0
        %v1525 = vpop.f32.mrb[0].mxu0
        %1526 = vdwg.mxu0
        %v1527 = vadd.f32 %v1365, %v1522
        %v1528 = vsub.s32 %v361, 896
        %1529 = vset.pattern.permute.xlu0 0
        %1530 = vperm.xlu0 %1529, %v1528
        %v1531 = vpop.permute.xlu0 %1530
        %vm1532 = vcmp.eq.s32.totalorder %v1531, %v394
        %v1533 = vsel %vm1532, 1, 0
        %v1534 = vcvt.s32.f32 %v1533
        %1535 = vset.pattern.permute.xlu0 1
        %1536 = vperm.xlu0 %1535, %v1528
        %v1537 = vpop.permute.xlu0 %1536
        %vm1538 = vcmp.eq.s32.totalorder %v1537, %v394
        %v1539 = vsel %vm1538, 1, 0
        %v1540 = vcvt.s32.f32 %v1539
        %v1541 = vadd.f32 %v1534, %v1540
        %1542 = vset.pattern.permute.xlu0 2
        %1543 = vperm.xlu0 %1542, %v1528
        %v1544 = vpop.permute.xlu0 %1543
        %vm1545 = vcmp.eq.s32.totalorder %v1544, %v394
        %v1546 = vsel %vm1545, 1, 0
        %v1547 = vcvt.s32.f32 %v1546
        %v1548 = vadd.f32 %v1541, %v1547
        %1549 = vset.pattern.permute.xlu0 3
        %1550 = vperm.xlu0 %1549, %v1528
        %v1551 = vpop.permute.xlu0 %1550
        %vm1552 = vcmp.eq.s32.totalorder %v1551, %v394
        %v1553 = vsel %vm1552, 1, 0
        %v1554 = vcvt.s32.f32 %v1553
        %v1555 = vadd.f32 %v1548, %v1554
        %1556 = vset.pattern.permute.xlu0 4
        %1557 = vperm.xlu0 %1556, %v1528
        %v1558 = vpop.permute.xlu0 %1557
        %vm1559 = vcmp.eq.s32.totalorder %v1558, %v394
        %v1560 = vsel %vm1559, 1, 0
        %v1561 = vcvt.s32.f32 %v1560
        %v1562 = vadd.f32 %v1555, %v1561
        %1563 = vset.pattern.permute.xlu0 5
        %1564 = vperm.xlu0 %1563, %v1528
        %v1565 = vpop.permute.xlu0 %1564
        %vm1566 = vcmp.eq.s32.totalorder %v1565, %v394
        %v1567 = vsel %vm1566, 1, 0
        %v1568 = vcvt.s32.f32 %v1567
        %v1569 = vadd.f32 %v1562, %v1568
        %1570 = vset.pattern.permute.xlu0 6
        %1571 = vperm.xlu0 %1570, %v1528
        %v1572 = vpop.permute.xlu0 %1571
        %vm1573 = vcmp.eq.s32.totalorder %v1572, %v394
        %v1574 = vsel %vm1573, 1, 0
        %v1575 = vcvt.s32.f32 %v1574
        %v1576 = vadd.f32 %v1569, %v1575
        %1577 = vset.pattern.permute.xlu0 7
        %1578 = vperm.xlu0 %1577, %v1528
        %v1579 = vpop.permute.xlu0 %1578
        %vm1580 = vcmp.eq.s32.totalorder %v1579, %v394
        %v1581 = vsel %vm1580, 1, 0
        %v1582 = vcvt.s32.f32 %v1581
        %v1583 = vadd.f32 %v1576, %v1582
        %v1584 = vpack.c.bf16 %v1583, %v1583
        %v1585 = vld [vmem:[#allocation2 + $0x1c0] sm:$0xf]
        %v1586 = vld [vmem:[#allocation2 + $0x1c4] sm:$0xf]
        %v1587 = vld [vmem:[#allocation2 + $0x1c8] sm:$0xf]
        %v1588 = vld [vmem:[#allocation2 + $0x1cc] sm:$0xf]
        %v1589 = vld [vmem:[#allocation2 + $0x1d0] sm:$0xf]
        %v1590 = vld [vmem:[#allocation2 + $0x1d4] sm:$0xf]
        %v1591 = vld [vmem:[#allocation2 + $0x1d8] sm:$0xf]
        %v1592 = vld [vmem:[#allocation2 + $0x1dc] sm:$0xf]
        %v1593 = vld [vmem:[#allocation2 + $0x1e0] sm:$0xf]
        %v1594 = vld [vmem:[#allocation2 + $0x1e4] sm:$0xf]
        %v1595 = vld [vmem:[#allocation2 + $0x1e8] sm:$0xf]
        %v1596 = vld [vmem:[#allocation2 + $0x1ec] sm:$0xf]
        %v1597 = vld [vmem:[#allocation2 + $0x1f0] sm:$0xf]
        %v1598 = vld [vmem:[#allocation2 + $0x1f4] sm:$0xf]
        %v1599 = vld [vmem:[#allocation2 + $0x1f8] sm:$0xf]
        %v1600 = vld [vmem:[#allocation2 + $0x1fc] sm:$0xf]
        %v1617 = vunpack.c.l.b16 %v1585
        %v1618 = vunpack.c.l.b16 %v1586
        %v1619 = vunpack.c.l.b16 %v1587
        %v1620 = vunpack.c.l.b16 %v1588
        %v1621 = vunpack.c.l.b16 %v1589
        %v1622 = vunpack.c.l.b16 %v1590
        %v1623 = vunpack.c.l.b16 %v1591
        %v1624 = vunpack.c.l.b16 %v1592
        %v1625 = vunpack.c.l.b16 %v1593
        %v1626 = vunpack.c.l.b16 %v1594
        %v1627 = vunpack.c.l.b16 %v1595
        %v1628 = vunpack.c.l.b16 %v1596
        %v1629 = vunpack.c.l.b16 %v1597
        %v1630 = vunpack.c.l.b16 %v1598
        %v1631 = vunpack.c.l.b16 %v1599
        %v1632 = vunpack.c.l.b16 %v1600
        %v1633 = vpack.c.b16 %v1618, %v1617
        %v1634 = vpack.c.b16 %v1620, %v1619
        %v1635 = vpack.c.b16 %v1622, %v1621
        %v1636 = vpack.c.b16 %v1624, %v1623
        %v1637 = vpack.c.b16 %v1626, %v1625
        %v1638 = vpack.c.b16 %v1628, %v1627
        %v1639 = vpack.c.b16 %v1630, %v1629
        %v1640 = vpack.c.b16 %v1632, %v1631
        %1649 = vmatprep.subr.bf16.mxu0 0
        %1650 = vmatpush1.bf16.msra.mxu0 %v1633
        %1651 = vmatprep.subr.bf16.mxu0 0
        %1652 = vmatpush1.bf16.msra.mxu0 %v1634
        %1653 = vmatprep.subr.bf16.mxu0 0
        %1654 = vmatpush1.bf16.msra.mxu0 %v1635
        %1655 = vmatprep.subr.bf16.mxu0 0
        %1656 = vmatpush1.bf16.msra.mxu0 %v1636
        %1657 = vmatprep.subr.bf16.mxu0 0
        %1658 = vmatpush1.bf16.msra.mxu0 %v1637
        %1659 = vmatprep.subr.bf16.mxu0 0
        %1660 = vmatpush1.bf16.msra.mxu0 %v1638
        %1661 = vmatprep.subr.bf16.mxu0 0
        %1662 = vmatpush1.bf16.msra.mxu0 %v1639
        %1663 = vmatprep.subr.bf16.mxu0 0
        %1664 = vmatpush1.bf16.msra.mxu0 %v1640
        %1665 = vmatprep.subr.bf16.mxu0 0
        %1666 = vmatpush1.bf16.msra.mxu0 0
        %1667 = vmatprep.subr.bf16.mxu0 0
        %1668 = vmatpush1.bf16.msra.mxu0 0
        %1669 = vmatprep.subr.bf16.mxu0 0
        %1670 = vmatpush1.bf16.msra.mxu0 0
        %1671 = vmatprep.subr.bf16.mxu0 0
        %1672 = vmatpush1.bf16.msra.mxu0 0
        %1673 = vmatprep.subr.bf16.mxu0 0
        %1674 = vmatpush1.bf16.msra.mxu0 0
        %1675 = vmatprep.subr.bf16.mxu0 0
        %1676 = vmatpush1.bf16.msra.mxu0 0
        %1677 = vmatprep.subr.bf16.mxu0 0
        %1678 = vmatpush1.bf16.msra.mxu0 0
        %1679 = vmatprep.subr.bf16.mxu0 0
        %1680 = vmatpush1.bf16.msra.mxu0 0
        %1681 = vmatprep.mubr.bf16.mxu0 0
        %1682 = vmatmul.mubr.bf16.gmra.mrb[0].mxu0 %v1584
        %v1683 = vpop.f32.mrb[0].mxu0
        %v1684 = vadd.f32 0.0, %v1683
        %v1685 = vpop.f32.mrb[0].mxu0
        %v1686 = vpop.f32.mrb[0].mxu0
        %v1687 = vpop.f32.mrb[0].mxu0
        %1688 = vdwg.mxu0
        %v1689 = vadd.f32 %v1527, %v1684
        %v1690 = vmax.f32 %v1689, 0.0
        %v1691 = vpack.c.bf16 %v1690, %v1690
        %v1692 = vld [vmem:[%s5] sm:$0xf]
        %v1693 = vld [vmem:[%s5 + $0x4] sm:$0xf]
        %v1694 = vld [vmem:[%s5 + $0x8] sm:$0xf]
        %v1695 = vld [vmem:[%s5 + $0xc] sm:$0xf]
        %v1696 = vld [vmem:[%s5 + $0x10] sm:$0xf]
        %v1697 = vld [vmem:[%s5 + $0x14] sm:$0xf]
        %v1698 = vld [vmem:[%s5 + $0x18] sm:$0xf]
        %v1699 = vld [vmem:[%s5 + $0x1c] sm:$0xf]
        %v1700 = vld [vmem:[%s5 + $0x20] sm:$0xf]
        %v1701 = vld [vmem:[%s5 + $0x24] sm:$0xf]
        %v1702 = vld [vmem:[%s5 + $0x28] sm:$0xf]
        %v1703 = vld [vmem:[%s5 + $0x2c] sm:$0xf]
        %v1704 = vld [vmem:[%s5 + $0x30] sm:$0xf]
        %v1705 = vld [vmem:[%s5 + $0x34] sm:$0xf]
        %v1706 = vld [vmem:[%s5 + $0x38] sm:$0xf]
        %v1707 = vld [vmem:[%s5 + $0x3c] sm:$0xf]
        %v1708 = vld [vmem:[%s6] sm:$0x1]
        %v1710 = vlaneseq
        %v1711 = vshrl.u32 %v1710, 7
        %v1712 = vsub.s32 0, %v1711
        %v1713 = vrot.slane %v1708, %v1712
        %v1731 = vunpack.c.l.b16 %v1692
        %v1732 = vunpack.c.l.b16 %v1693
        %v1733 = vunpack.c.l.b16 %v1694
        %v1734 = vunpack.c.l.b16 %v1695
        %v1735 = vunpack.c.l.b16 %v1696
        %v1736 = vunpack.c.l.b16 %v1697
        %v1737 = vunpack.c.l.b16 %v1698
        %v1738 = vunpack.c.l.b16 %v1699
        %v1739 = vunpack.c.l.b16 %v1700
        %v1740 = vunpack.c.l.b16 %v1701
        %v1741 = vunpack.c.l.b16 %v1702
        %v1742 = vunpack.c.l.b16 %v1703
        %v1743 = vunpack.c.l.b16 %v1704
        %v1744 = vunpack.c.l.b16 %v1705
        %v1745 = vunpack.c.l.b16 %v1706
        %v1746 = vunpack.c.l.b16 %v1707
        %v1747 = vpack.c.b16 %v1732, %v1731
        %v1748 = vpack.c.b16 %v1734, %v1733
        %v1749 = vpack.c.b16 %v1736, %v1735
        %v1750 = vpack.c.b16 %v1738, %v1737
        %v1751 = vpack.c.b16 %v1740, %v1739
        %v1752 = vpack.c.b16 %v1742, %v1741
        %v1753 = vpack.c.b16 %v1744, %v1743
        %v1754 = vpack.c.b16 %v1746, %v1745
        %1763 = vmatprep.subr.bf16.mxu0 0
        %1764 = vmatpush1.bf16.msra.mxu0 %v1747
        %1765 = vmatprep.subr.bf16.mxu0 0
        %1766 = vmatpush1.bf16.msra.mxu0 %v1748
        %1767 = vmatprep.subr.bf16.mxu0 0
        %1768 = vmatpush1.bf16.msra.mxu0 %v1749
        %1769 = vmatprep.subr.bf16.mxu0 0
        %1770 = vmatpush1.bf16.msra.mxu0 %v1750
        %1771 = vmatprep.subr.bf16.mxu0 0
        %1772 = vmatpush1.bf16.msra.mxu0 %v1751
        %1773 = vmatprep.subr.bf16.mxu0 0
        %1774 = vmatpush1.bf16.msra.mxu0 %v1752
        %1775 = vmatprep.subr.bf16.mxu0 0
        %1776 = vmatpush1.bf16.msra.mxu0 %v1753
        %1777 = vmatprep.subr.bf16.mxu0 0
        %1778 = vmatpush1.bf16.msra.mxu0 %v1754
        %1779 = vmatprep.subr.bf16.mxu0 0
        %1780 = vmatpush1.bf16.msra.mxu0 0
        %1781 = vmatprep.subr.bf16.mxu0 0
        %1782 = vmatpush1.bf16.msra.mxu0 0
        %1783 = vmatprep.subr.bf16.mxu0 0
        %1784 = vmatpush1.bf16.msra.mxu0 0
        %1785 = vmatprep.subr.bf16.mxu0 0
        %1786 = vmatpush1.bf16.msra.mxu0 0
        %1787 = vmatprep.subr.bf16.mxu0 0
        %1788 = vmatpush1.bf16.msra.mxu0 0
        %1789 = vmatprep.subr.bf16.mxu0 0
        %1790 = vmatpush1.bf16.msra.mxu0 0
        %1791 = vmatprep.subr.bf16.mxu0 0
        %1792 = vmatpush1.bf16.msra.mxu0 0
        %1793 = vmatprep.subr.bf16.mxu0 0
        %1794 = vmatpush1.bf16.msra.mxu0 0
        %1795 = vmatprep.mubr.bf16.mxu0 0
        %1796 = vmatmul.mubr.bf16.gmra.mrb[0].mxu0 %v1691
        %v1797 = vpop.f32.mrb[0].mxu0
        %v1798 = vadd.f32 %v1713, %v1797
        %v1799 = vpop.f32.mrb[0].mxu0
        %v1800 = vpop.f32.mrb[0].mxu0
        %v1801 = vpop.f32.mrb[0].mxu0
        %1802 = vdwg.mxu0
        %v1803 = vmax.f32 %v1798, 0.0
        %v1804 = vpack.c.bf16 %v1803, %v1803
        %v1805 = vld [vmem:[%s7] sm:$0xf]
        %v1806 = vld [vmem:[%s7 + $0x4] sm:$0xf]
        %v1807 = vld [vmem:[%s7 + $0x8] sm:$0xf]
        %v1808 = vld [vmem:[%s7 + $0xc] sm:$0xf]
        %v1809 = vld [vmem:[%s7 + $0x10] sm:$0xf]
        %v1810 = vld [vmem:[%s7 + $0x14] sm:$0xf]
        %v1811 = vld [vmem:[%s7 + $0x18] sm:$0xf]
        %v1812 = vld [vmem:[%s7 + $0x1c] sm:$0xf]
        %v1813 = vld [vmem:[%s8] sm:$0x1]
        %v1815 = vlaneseq
        %v1816 = vshrl.u32 %v1815, 7
        %v1817 = vsub.s32 0, %v1816
        %v1818 = vrot.slane %v1813, %v1817
        %v1828 = vunpack.c.l.b16 %v1805
        %v1829 = vunpack.c.l.b16 %v1806
        %v1830 = vunpack.c.l.b16 %v1807
        %v1831 = vunpack.c.l.b16 %v1808
        %v1832 = vunpack.c.l.b16 %v1809
        %v1833 = vunpack.c.l.b16 %v1810
        %v1834 = vunpack.c.l.b16 %v1811
        %v1835 = vunpack.c.l.b16 %v1812
        %v1836 = vpack.c.b16 %v1829, %v1828
        %v1837 = vpack.c.b16 %v1831, %v1830
        %v1838 = vpack.c.b16 %v1833, %v1832
        %v1839 = vpack.c.b16 %v1835, %v1834
        %vm1844 = vcmask 523264
        %v1846 = vsel %vm1844, %v1804, 0
        %1848 = vmatprep.subr.bf16.mxu0 0
        %1849 = vmatpush1.bf16.msra.mxu0 %v1836
        %1850 = vmatprep.subr.bf16.mxu0 0
        %1851 = vmatpush1.bf16.msra.mxu0 %v1837
        %1852 = vmatprep.subr.bf16.mxu0 0
        %1853 = vmatpush1.bf16.msra.mxu0 %v1838
        %1854 = vmatprep.subr.bf16.mxu0 0
        %1855 = vmatpush1.bf16.msra.mxu0 %v1839
        %1856 = vmatprep.subr.bf16.mxu0 0
        %1857 = vmatpush1.bf16.msra.mxu0 0
        %1858 = vmatprep.subr.bf16.mxu0 0
        %1859 = vmatpush1.bf16.msra.mxu0 0
        %1860 = vmatprep.subr.bf16.mxu0 0
        %1861 = vmatpush1.bf16.msra.mxu0 0
        %1862 = vmatprep.subr.bf16.mxu0 0
        %1863 = vmatpush1.bf16.msra.mxu0 0
        %1864 = vmatprep.subr.bf16.mxu0 0
        %1865 = vmatpush1.bf16.msra.mxu0 0
        %1866 = vmatprep.subr.bf16.mxu0 0
        %1867 = vmatpush1.bf16.msra.mxu0 0
        %1868 = vmatprep.subr.bf16.mxu0 0
        %1869 = vmatpush1.bf16.msra.mxu0 0
        %1870 = vmatprep.subr.bf16.mxu0 0
        %1871 = vmatpush1.bf16.msra.mxu0 0
        %1872 = vmatprep.subr.bf16.mxu0 0
        %1873 = vmatpush1.bf16.msra.mxu0 0
        %1874 = vmatprep.subr.bf16.mxu0 0
        %1875 = vmatpush1.bf16.msra.mxu0 0
        %1876 = vmatprep.subr.bf16.mxu0 0
        %1877 = vmatpush1.bf16.msra.mxu0 0
        %1878 = vmatprep.subr.bf16.mxu0 0
        %1879 = vmatpush1.bf16.msra.mxu0 0
        %1880 = vmatprep.mubr.bf16.mxu0 0
        %1881 = vmatmul.mubr.bf16.gmra.mrb[0].mxu0 %v1846
        %v1882 = vpop.f32.mrb[0].mxu0
        %v1883 = vadd.f32 %v1818, %v1882
        %v1884 = vpop.f32.mrb[0].mxu0
        %v1885 = vpop.f32.mrb[0].mxu0
        %v1886 = vpop.f32.mrb[0].mxu0
        %1887 = vdwg.mxu0
        %1888 = vst [vmem:[%s351] sm:$0xff] %v1883
        %s1889 = sand.u32 %s231, 1
        %s1890 = scalar_lea.sflag [#allocation4], %s1889
        %s1891 = sand.u32 %s231, 1
        %s1892 = smul.addr %s1891, 8
        %s1893 = scalar_lea.vmem [#allocation5], %s1892
        // Predicated region
        $region61: #{tpu_custom_call.1} parent=55 // pred_check
          %p1894 = pneg %p241
        $region62: #{tpu_custom_call.1} parent=55 // pred_check_branch
          %1896 = sbr.rel (%p1894) target = $region64
        $region63: #{tpu_custom_call.1} parent=55 // pred_region
          %s1898 = ssub.s32 128, 128
          %1899 = vsyncadd %s1890, %s1898
          %s1900 = smul.addr %s24, 128
          %s1901 = scalar_lea.hbm %s9, %s1900
          %s1903 = sshll.u32 %s1893, 4
          %s1904 = int_to_ptr.vmem [resolvable:$true] %s1903
          %1906 = dma.vmem_to_hbm [thread:$0]  %s1904, 128, %s1901, %s1890
        $region64: #{tpu_custom_call.1} parent=55 // pred_fallthru
          _
      $region56: #{tpu_custom_call.1} parent=5 // pred_fallthru
        _
      %p1907 = scmp.le.s32.totalorder 2, %s19
      // Predicated region
      $region65: #{tpu_custom_call.1} parent=5 // pred_check
        %p1908 = pneg %p1907
      $region66: #{tpu_custom_call.1} parent=5 // pred_check_branch
        %1910 = sbr.rel (%p1908) target = $region68
      $region67: #{tpu_custom_call.1} parent=5 // pred_region
        %s1911 = ssub.s32 %s19, 2
        // Predicated region
        $region69: #{tpu_custom_call.1} parent=67 // pred_check
          %p1912 = pneg %p247
        $region70: #{tpu_custom_call.1} parent=67 // pred_check_branch
          %1914 = sbr.rel (%p1912) target = $region72
        $region71: #{tpu_custom_call.1} parent=67 // pred_region
          %s1915 = sand.u32 %s232, 1
          %s1916 = scalar_lea.sflag [#allocation4], %s1915
          %s1917 = sand.u32 %s232, 1
          %s1918 = smul.addr %s1917, 8
          %s1919 = scalar_lea.vmem [#allocation5], %s1918
          %1920 = dma.done %s1916, 128
        $region72: #{tpu_custom_call.1} parent=67 // pred_fallthru
          _
      $region68: #{tpu_custom_call.1} parent=5 // pred_fallthru
        _
    $region6: #{tpu_custom_call.1} parent=1 // loop_footer
      %s23 = sadd.s32 1, %s19
    $region7: #{tpu_custom_call.1} parent=1 // loop_footer_branch
      %18 = sbr.rel target = $region3
    $region8: #{tpu_custom_call.1} parent=1 // loop_exit
      _
    %1921 = vsyncpa [#allocation3], 1
    %s1922 = scalar_lea.sflag [#allocation3], 1
    %1923 = vsyncpa %s1922, 1
    %1924 = vsyncpa [#allocation4], 1
    %s1925 = scalar_lea.sflag [#allocation4], 1
    %1926 = vsyncpa %s1925, 1

</llo_original>
